<compile_context>
chip_gen: v5e
topology: v5e:2x2
jax: 0.10.0
libtpu: 0.0.40
codegen_flags: <defaults>
</compile_context>

<pallas_src>
import functools

import jax
import jax.numpy as jnp
from jax.experimental import pallas as pl
from jax.experimental.pallas import tpu as pltpu


# ---------------------------------------------------------------------------
# Small helpers
# ---------------------------------------------------------------------------
def _round_up(x, m):
    return (x + m - 1) // m * m


def _pad_axis(x, size, axis):
    pad = size - x.shape[axis]
    if pad <= 0:
        return x
    widths = [(0, 0)] * x.ndim
    widths[axis] = (0, pad)
    return jnp.pad(x, widths)


def _pad_gates(w, H, Hp):
    """[rows, 3H] -> [rows, 3*Hp]; gate g's H real columns start at g*Hp."""
    rows = w.shape[0]
    out = jnp.zeros((rows, 3 * Hp), w.dtype)
    for g in range(3):
        out = out.at[:, g * Hp:g * Hp + H].set(w[:, g * H:(g + 1) * H])
    return out


def _dual_tensorcore_hint():
    """True on chips where the 'parallel' batch axis shards across 2 TCs."""
    try:
        kind = jax.devices()[0].device_kind.lower()
    except Exception:
        return False
    return any(tag in kind for tag in ("v7", "tpu7", "v5p", "v4"))


def _choose_batch_tile(B, dual_core, max_tile=256):
    """Single TB=Bp tile on single-TC chips; >=2 tiles on dual-TC chips."""
    bp8 = _round_up(max(B, 8), 8)
    if dual_core and bp8 >= 16:
        tb = _round_up(-(-bp8 // 2), 8)
    else:
        tb = bp8
    return min(tb, max_tile)


# ---------------------------------------------------------------------------
# Kernel
# ---------------------------------------------------------------------------
def _gru_seq_kernel(gx_ref, h0_ref, wh_ref, out_ref, h_carry,
                    *, h_pad, h_real, tc, pack_z):
    """GRU recurrence over a (batch_tile, time_chunk) grid.

    gx_ref : [Tc, TB, 3*Hp]  precomputed x@Wx + b (gate-aligned, lane-dense)
    h0_ref : [TB, Hp]        initial latent state for this batch tile (resident)
    wh_ref : [Hp, 3*Hp]      hidden-to-hidden weights (z|r|n, resident)
    out_ref: [Tc, TB, OW]    OW = Hp  (packed: h at [0:H], z at [H:2H])
                             or 2*Hp (fallback when 2*H > Hp)
    h_carry: VMEM scratch [TB, Hp], persists across the time-chunk axis
    """
    Hp, H = h_pad, h_real
    TB = h_carry.shape[0]

    @pl.when(pl.program_id(1) == 0)
    def _():
        h_carry[...] = h0_ref[...]

    # Hoisted loop-invariant constant (JAX does not CSE broadcasts in loops).
    if pack_z and Hp > 2 * H:
        lane_pad = jnp.zeros((TB, Hp - 2 * H), jnp.float32)

    def step(i, h):
        # Gate-by-gate (three N=128 matmuls, consumed immediately) keeps vreg
        # pressure down at TB up to 256; the MXU work is identical.
        gh_z = jnp.dot(h, wh_ref[:, 0:Hp], preferred_element_type=jnp.float32)
        z = jax.nn.sigmoid(gx_ref[i, :, 0:Hp] + gh_z)
        gh_r = jnp.dot(h, wh_ref[:, Hp:2 * Hp],
                       preferred_element_type=jnp.float32)
        r = jax.nn.sigmoid(gx_ref[i, :, Hp:2 * Hp] + gh_r)
        gh_n = jnp.dot(h, wh_ref[:, 2 * Hp:3 * Hp],
                       preferred_element_type=jnp.float32)
        n = jnp.tanh(gx_ref[i, :, 2 * Hp:3 * Hp] + r * gh_n)
        h_new = (1.0 - z) * n + z * h

        if pack_z:
            # Single lane-dense Hp-wide store: [h | z | 0...]; halves output
            # writeback vs a 2*Hp block while keeping f32 exactness.
            pieces = [h_new[:, :H], z[:, :H]]
            if Hp > 2 * H:
                pieces.append(lane_pad)
            out_ref[i] = jnp.concatenate(pieces, axis=-1).astype(out_ref.dtype)
        else:
            out_ref[i, :, 0:Hp] = h_new.astype(out_ref.dtype)
            out_ref[i, :, Hp:2 * Hp] = z.astype(out_ref.dtype)
        return h_new

    h_final = jax.lax.fori_loop(0, tc, step, h_carry[...], unroll=True)
    h_carry[...] = h_final


# ---------------------------------------------------------------------------
# Jitted driver: padding + input projection + pallas_call
# ---------------------------------------------------------------------------
@functools.partial(jax.jit,
                   static_argnames=("h_dim", "h_pad", "tb", "tc", "pack_z"))
def _gru_sequence_fwd(x_seq, h0, w_x, bias, wh_p, *, h_dim, h_pad, tb, tc,
                      pack_z):
    """x_seq: [T, B, D]  h0: [B, H]  ->  (latents [T,B,H], gates [T,B,H])."""
    T, B, _ = x_seq.shape
    H, Hp = h_dim, h_pad
    Bp = _round_up(_round_up(B, 8), tb)
    Tp = _round_up(T, tc)

    # Input projection: time-parallel, off the recurrent critical path.
    gx = x_seq.astype(jnp.float32) @ w_x + bias              # [T, B, 3H]
    gx = gx.reshape(T, B, 3, H)
    gx = jnp.pad(gx, ((0, Tp - T), (0, Bp - B), (0, 0), (0, Hp - H)))
    gx = gx.reshape(Tp, Bp, 3 * Hp)                          # gate-aligned

    h0_p = jnp.pad(h0.astype(jnp.float32), ((0, Bp - B), (0, Hp - H)))

    out_w = Hp if pack_z else 2 * Hp
    kernel = functools.partial(_gru_seq_kernel, h_pad=Hp, h_real=H, tc=tc,
                               pack_z=pack_z)
    out = pl.pallas_call(
        kernel,
        out_shape=jax.ShapeDtypeStruct((Tp, Bp, out_w), jnp.float32),
        grid=(Bp // tb, Tp // tc),
        in_specs=[
            pl.BlockSpec((tc, tb, 3 * Hp), lambda b, t: (t, b, 0)),   # gx chunk
            pl.BlockSpec((tb, Hp), lambda b, t: (b, 0)),              # h0 (resident per tile)
            pl.BlockSpec((Hp, 3 * Hp), lambda b, t: (0, 0)),          # W_h (resident)
        ],
        out_specs=pl.BlockSpec((tc, tb, out_w), lambda b, t: (t, b, 0)),
        scratch_shapes=[pltpu.VMEM((tb, Hp), jnp.float32)],           # h carry
        compiler_params=pltpu.CompilerParams(
            dimension_semantics=("parallel", "arbitrary")),
    )(gx, h0_p, wh_p)

    z_off = H if pack_z else Hp
    latents = out[:T, :B, :H]
    gates = out[:T, :B, z_off:z_off + H]
    return latents, gates


# ---------------------------------------------------------------------------
# Model
# ---------------------------------------------------------------------------
class RNNTypeModel:
    """JAX/Pallas port of GPL/BeliefModel.RNNTypeModel with a concrete
    GRU-style propagate.  The sequential recurrence runs in a single
    pallas_call (time-chunked grid, VMEM-resident weights)."""

    def __init__(self, action_space, encoding_dimension, obs_dim,
                 n_other_agents=1, batch_tile=None, time_chunk=8):
        self.action_space = action_space
        self.encoding_dimension = encoding_dimension
        self.obs_dim = obs_dim
        self.n_other_agents = n_other_agents
        self.batch_tile = batch_tile            # None => auto per device gen
        self.time_chunk = time_chunk

        H = encoding_dimension
        D = obs_dim + action_space + n_other_agents * action_space
        self.input_dim = D
        self.h_pad = _round_up(max(H, 128), 128)   # lane-align gate blocks
        self.pack_z = (2 * H <= self.h_pad)        # packed [h|z] output fits
        self._dual_core = _dual_tensorcore_hint()

        # Deterministic parameter init (synthetic, no checkpoint load).
        kx, kh, kb = jax.random.split(jax.random.PRNGKey(42), 3)
        self.W_x = jax.random.normal(kx, (D, 3 * H), jnp.float32) / jnp.sqrt(
            jnp.float32(D))
        self.W_h = jax.random.normal(kh, (H, 3 * H), jnp.float32) / jnp.sqrt(
            jnp.float32(H))
        self.b = jax.random.normal(kb, (1, 3 * H), jnp.float32) * 0.01

        # Kernel-layout (padded, lane-aligned) W_h, built once.
        Hp = self.h_pad
        self._Wh_p = _pad_axis(_pad_gates(self.W_h, H, Hp), Hp, axis=0)

    # -- latent-state helpers -------------------------------------------------
    def new_latent_state(self, batch_size):
        return jnp.zeros((batch_size, self.encoding_dimension), jnp.float32)

    # -- kernel driver --------------------------------------------------------
    def _run(self, x_seq, h0):
        T, B, _ = x_seq.shape
        if self.batch_tile is None:
            tb = _choose_batch_tile(B, self._dual_core)
        else:
            tb = min(_round_up(self.batch_tile, 8), _round_up(max(B, 8), 8))
        tc = max(1, min(self.time_chunk, T))
        return _gru_sequence_fwd(
            x_seq, h0, self.W_x, self.b, self._Wh_p,
            h_dim=self.encoding_dimension, h_pad=self.h_pad,
            tb=tb, tc=tc, pack_z=self.pack_z)

    # -- single-step propagate (module semantics) -----------------------------
    def propagate(self, observation, actions, previous_latent_state,
                  other_actions):
        x = jnp.concatenate([observation, actions, other_actions],
                            axis=-1).astype(jnp.float32)
        latents, gates = self._run(x[None], previous_latent_state)
        return latents[0], gates[0]

    # -- multi-step propagate: recurrence amortised inside one kernel ---------
    def propagate_sequence(self, obs_seq, actions_seq, other_actions_seq,
                           previous_latent_state):
        x_seq = jnp.concatenate([obs_seq, actions_seq, other_actions_seq],
                                axis=-1).astype(jnp.float32)
        latents, gates = self._run(x_seq, previous_latent_state)
        return latents, gates, latents[-1]

    # -- forward (matches the PyTorch module) ---------------------------------
    def forward(self, current_memory):
        policy_return = {'latent_state': None, 'others': None}
        latent_state, others = self.propagate(
            observation=current_memory['current_obs'],
            actions=jax.lax.stop_gradient(current_memory['actions']),
            previous_latent_state=current_memory['states'],
            other_actions=current_memory['other_actions'],
        )
        policy_return['latent_state'] = latent_state
        policy_return['others'] = others
        return policy_return

    __call__ = forward


# ---------------------------------------------------------------------------
# Pure-JAX reference
# ---------------------------------------------------------------------------
def _reference_step(model, x, h):
    H = model.encoding_dimension
    gx = x @ model.W_x + model.b
    gh = h @ model.W_h
    z = jax.nn.sigmoid(gx[:, :H] + gh[:, :H])
    r = jax.nn.sigmoid(gx[:, H:2 * H] + gh[:, H:2 * H])
    n = jnp.tanh(gx[:, 2 * H:] + r * gh[:, 2 * H:])
    return (1.0 - z) * n + z * h, z


def _reference_sequence(model, obs_seq, act_seq, oact_seq, h0):
    def step(h, inp):
        obs, a, oa = inp
        x = jnp.concatenate([obs, a, oa], axis=-1)
        h_new, z = _reference_step(model, x, h)
        return h_new, (h_new, z)

    h_final, (hs, zs) = jax.lax.scan(step, h0, (obs_seq, act_seq, oact_seq))
    return hs, zs, h_final


# ---------------------------------------------------------------------------
# Demo / correctness check
# ---------------------------------------------------------------------------
if __name__ == "__main__":
    ACTION_SPACE = 4
    OBS_DIM = 16
    ENC_DIM = 32
    NUM_ENVS = 8
    NUM_PARTICLES = 32     # folded into the batch -> B = 256 (fills MXU rows)
    T = 8                  # sequence length for the in-kernel recurrence

    B = NUM_ENVS * NUM_PARTICLES
    model = RNNTypeModel(action_space=ACTION_SPACE,
                         encoding_dimension=ENC_DIM,
                         obs_dim=OBS_DIM,
                         n_other_agents=1)

    key = jax.random.PRNGKey(0)
    k_obs, k_act, k_oact, k_state = jax.random.split(key, 4)

    obs_seq = jax.random.normal(k_obs, (T, B, OBS_DIM), jnp.float32)
    actions_seq = jax.nn.one_hot(
        jax.random.randint(k_act, (T, B), 0, ACTION_SPACE), ACTION_SPACE,
        dtype=jnp.float32)
    other_actions_seq = jax.nn.one_hot(
        jax.random.randint(k_oact, (T, B), 0, ACTION_SPACE), ACTION_SPACE,
        dtype=jnp.float32)
    h0 = jax.random.normal(k_state, (B, ENC_DIM), jnp.float32) * 0.1

    # ---- single-step forward (module semantics) -----------------------------
    current_memory = {
        'current_obs': obs_seq[0],
        'actions': actions_seq[0],
        'states': h0,
        'other_actions': other_actions_seq[0],
    }
    out = model(current_memory)
    latent = jax.block_until_ready(out['latent_state'])
    others = jax.block_until_ready(out['others'])

    x0 = jnp.concatenate([obs_seq[0], actions_seq[0], other_actions_seq[0]], -1)
    ref_latent, ref_z = _reference_step(model, x0, h0)
    assert latent.shape == (B, ENC_DIM) and others.shape == (B, ENC_DIM)
    assert jnp.allclose(latent, ref_latent, atol=1e-4, rtol=1e-4)
    assert jnp.allclose(others, ref_z, atol=1e-4, rtol=1e-4)

    # ---- full-sequence propagate (time-chunked in-kernel recurrence) --------
    latents, gates, h_final = model.propagate_sequence(
        obs_seq, actions_seq, other_actions_seq, h0)
    latents = jax.block_until_ready(latents)
    gates = jax.block_until_ready(gates)
    h_final = jax.block_until_ready(h_final)

    ref_hs, ref_zs, ref_hf = _reference_sequence(
        model, obs_seq, actions_seq, other_actions_seq, h0)
    assert latents.shape == (T, B, ENC_DIM) and gates.shape == (T, B, ENC_DIM)
    assert jnp.allclose(latents, ref_hs, atol=1e-4, rtol=1e-4)
    assert jnp.allclose(gates, ref_zs, atol=1e-4, rtol=1e-4)
    assert jnp.allclose(h_final, ref_hf, atol=1e-4, rtol=1e-4)

    # ---- multi-batch-tile / multi-time-chunk robustness check ---------------
    # Forces 4 batch tiles x 2 time chunks so the per-tile h_carry reset and
    # the cross-chunk carry are exercised on every TPU generation.
    model.batch_tile, model.time_chunk = 64, 4
    lat_mt, gate_mt, hf_mt = model.propagate_sequence(
        obs_seq, actions_seq, other_actions_seq, h0)
    lat_mt = jax.block_until_ready(lat_mt)
    assert jnp.allclose(lat_mt, ref_hs, atol=1e-4, rtol=1e-4)
    assert jnp.allclose(gate_mt, ref_zs, atol=1e-4, rtol=1e-4)
    assert jnp.allclose(hf_mt, ref_hf, atol=1e-4, rtol=1e-4)
    model.batch_tile, model.time_chunk = None, 8

    print("KERNEL_OK")
</pallas_src>

<mosaic_0001>
module attributes {stable_mosaic.version = 11 : i64} {
  func.func @_gru_seq_kernel(%arg0: i32, %arg1: i32, %arg2: memref<1x256x384xf32, #tpu.memory_space<vmem>>, %arg3: memref<256x128xf32, #tpu.memory_space<vmem>>, %arg4: memref<128x384xf32, #tpu.memory_space<vmem>>, %arg5: memref<1x256x128xf32, #tpu.memory_space<vmem>>, %arg6: memref<256x128xf32, #tpu.memory_space<vmem>>) attributes {dimension_semantics = [#tpu.dimension_semantics<parallel>, #tpu.dimension_semantics<arbitrary>], iteration_bounds = array<i64: 1, 1>, scalar_prefetch = 0 : i64, scratch_operands = 1 : i64, tpu.core_type = #tpu.core_type<tc>, window_params = [{transform_indices = @transform_0, window_bounds = array<i64: 1, 256, 384>}, {transform_indices = @transform_1, window_bounds = array<i64: 256, 128>}, {pipeline_mode = #tpu.pipeline_mode<synchronous>, transform_indices = @transform_2, window_bounds = array<i64: 128, 384>}, {transform_indices = @transform_3, window_bounds = array<i64: 1, 256, 128>}]} {
    %c0_i32 = arith.constant 0 : i32
    %0 = arith.cmpi eq, %arg1, %c0_i32 : i32
    %1 = arith.extui %0 : i1 to i32
    %c0_i32_0 = arith.constant 0 : i32
    %2 = arith.cmpi ne, %1, %c0_i32_0 : i32
    scf.if %2 {
      %c0_23 = arith.constant 0 : index
      %c0_24 = arith.constant 0 : index
      %48 = vector.load %arg3[%c0_23, %c0_24] : memref<256x128xf32, #tpu.memory_space<vmem>>, vector<256x128xf32>
      %c0_25 = arith.constant 0 : index
      %c0_26 = arith.constant 0 : index
      %49 = vector.load %arg6[%c0_25, %c0_26] : memref<256x128xf32, #tpu.memory_space<vmem>>, vector<256x128xf32>
      tpu.vector_store %arg6[%c0_25, %c0_26], %48 {strides = array<i32>} : memref<256x128xf32, #tpu.memory_space<vmem>>, vector<256x128xf32>,
    } else {
    }
    %cst = arith.constant 0.000000e+00 : f32
    %3 = vector.broadcast %cst : f32 to vector<256x64xf32>
    %c0 = arith.constant 0 : index
    %c0_1 = arith.constant 0 : index
    %4 = vector.load %arg6[%c0, %c0_1] : memref<256x128xf32, #tpu.memory_space<vmem>>, vector<256x128xf32>
    %c0_i32_2 = arith.constant 0 : i32
    %c0_3 = arith.constant 0 : index
    %c0_4 = arith.constant 0 : index
    %5 = vector.load %arg4[%c0_3, %c0_4] : memref<128x384xf32, #tpu.memory_space<vmem>>, vector<128x128xf32>
    %cst_5 = arith.constant dense<0.000000e+00> : vector<256x128xf32>
    %6 = tpu.matmul %4, %5, %cst_5 {dimension_numbers = #tpu.dot_dimension_numbers<[1], [0], [0], [1], [0, 0, 1, 1], [], []>} : vector<256x128xf32>, vector<128x128xf32>, vector<256x128xf32> -> vector<256x128xf32>
    %7 = arith.index_cast %c0_i32_2 : i32 to index
    %c0_6 = arith.constant 0 : index
    %c0_7 = arith.constant 0 : index
    %8 = vector.load %arg2[%7, %c0_6, %c0_7] : memref<1x256x384xf32, #tpu.memory_space<vmem>>, vector<1x256x128xf32>
    %9 = vector.shape_cast %8 : vector<1x256x128xf32> to vector<256x128xf32>
    %10 = arith.addf %9, %6 : vector<256x128xf32>
    %11 = arith.negf %10 : vector<256x128xf32>
    %12 = math.exp %11 : vector<256x128xf32>
    %cst_8 = arith.constant 1.000000e+00 : f32
    %13 = vector.broadcast %cst_8 : f32 to vector<256x128xf32>
    %14 = arith.addf %13, %12 : vector<256x128xf32>
    %15 = arith.divf %13, %14 : vector<256x128xf32>
    %c0_9 = arith.constant 0 : index
    %c128 = arith.constant 128 : index
    %16 = vector.load %arg4[%c0_9, %c128] : memref<128x384xf32, #tpu.memory_space<vmem>>, vector<128x128xf32>
    %cst_10 = arith.constant dense<0.000000e+00> : vector<256x128xf32>
    %17 = tpu.matmul %4, %16, %cst_10 {dimension_numbers = #tpu.dot_dimension_numbers<[1], [0], [0], [1], [0, 0, 1, 1], [], []>} : vector<256x128xf32>, vector<128x128xf32>, vector<256x128xf32> -> vector<256x128xf32>
    %18 = arith.index_cast %c0_i32_2 : i32 to index
    %c0_11 = arith.constant 0 : index
    %c128_12 = arith.constant 128 : index
    %19 = vector.load %arg2[%18, %c0_11, %c128_12] : memref<1x256x384xf32, #tpu.memory_space<vmem>>, vector<1x256x128xf32>
    %20 = vector.shape_cast %19 : vector<1x256x128xf32> to vector<256x128xf32>
    %21 = arith.addf %20, %17 : vector<256x128xf32>
    %22 = arith.negf %21 : vector<256x128xf32>
    %23 = math.exp %22 : vector<256x128xf32>
    %cst_13 = arith.constant 1.000000e+00 : f32
    %24 = vector.broadcast %cst_13 : f32 to vector<256x128xf32>
    %25 = arith.addf %24, %23 : vector<256x128xf32>
    %26 = arith.divf %24, %25 : vector<256x128xf32>
    %c0_14 = arith.constant 0 : index
    %c256 = arith.constant 256 : index
    %27 = vector.load %arg4[%c0_14, %c256] : memref<128x384xf32, #tpu.memory_space<vmem>>, vector<128x128xf32>
    %cst_15 = arith.constant dense<0.000000e+00> : vector<256x128xf32>
    %28 = tpu.matmul %4, %27, %cst_15 {dimension_numbers = #tpu.dot_dimension_numbers<[1], [0], [0], [1], [0, 0, 1, 1], [], []>} : vector<256x128xf32>, vector<128x128xf32>, vector<256x128xf32> -> vector<256x128xf32>
    %29 = arith.index_cast %c0_i32_2 : i32 to index
    %c0_16 = arith.constant 0 : index
    %c256_17 = arith.constant 256 : index
    %30 = vector.load %arg2[%29, %c0_16, %c256_17] : memref<1x256x384xf32, #tpu.memory_space<vmem>>, vector<1x256x128xf32>
    %31 = vector.shape_cast %30 : vector<1x256x128xf32> to vector<256x128xf32>
    %32 = arith.mulf %26, %28 : vector<256x128xf32>
    %33 = arith.addf %31, %32 : vector<256x128xf32>
    %34 = math.tanh %33 : vector<256x128xf32>
    %cst_18 = arith.constant 1.000000e+00 : f32
    %35 = vector.broadcast %cst_18 : f32 to vector<256x128xf32>
    %36 = arith.subf %35, %15 : vector<256x128xf32>
    %37 = arith.mulf %36, %34 : vector<256x128xf32>
    %38 = arith.mulf %15, %4 : vector<256x128xf32>
    %39 = arith.addf %37, %38 : vector<256x128xf32>
    %40 = vector.extract_strided_slice %39 {offsets = [0, 0], sizes = [256, 32], strides = [1, 1]} : vector<256x128xf32> to vector<256x32xf32>
    %41 = vector.extract_strided_slice %15 {offsets = [0, 0], sizes = [256, 32], strides = [1, 1]} : vector<256x128xf32> to vector<256x32xf32>
    %42 = tpu.concatenate %40, %41, %3 in 1 : vector<256x32xf32>, vector<256x32xf32>, vector<256x64xf32> -> vector<256x128xf32>
    %43 = arith.index_cast %c0_i32_2 : i32 to index
    %c0_19 = arith.constant 0 : index
    %c0_20 = arith.constant 0 : index
    %44 = vector.load %arg5[%43, %c0_19, %c0_20] : memref<1x256x128xf32, #tpu.memory_space<vmem>>, vector<1x256x128xf32>
    %45 = vector.shape_cast %44 : vector<1x256x128xf32> to vector<256x128xf32>
    %46 = vector.shape_cast %42 : vector<256x128xf32> to vector<1x256x128xf32>
    tpu.vector_store %arg5[%43, %c0_19, %c0_20], %46 {strides = array<i32>} : memref<1x256x128xf32, #tpu.memory_space<vmem>>, vector<1x256x128xf32>,
    %c1_i32 = arith.constant 1 : i32
    %c0_21 = arith.constant 0 : index
    %c0_22 = arith.constant 0 : index
    %47 = vector.load %arg6[%c0_21, %c0_22] : memref<256x128xf32, #tpu.memory_space<vmem>>, vector<256x128xf32>
    tpu.vector_store %arg6[%c0_21, %c0_22], %39 {strides = array<i32>} : memref<256x128xf32, #tpu.memory_space<vmem>>, vector<256x128xf32>,
    return
  }
  func.func @transform_0(%arg0: i32, %arg1: i32) -> (i32, i32, i32) {
    %c0_i32 = arith.constant 0 : i32
    %c0_i32_0 = arith.constant 0 : i32
    return %arg1, %arg0, %c0_i32 : i32, i32, i32
  }
  func.func @transform_1(%arg0: i32, %arg1: i32) -> (i32, i32) {
    %c0_i32 = arith.constant 0 : i32
    %c0_i32_0 = arith.constant 0 : i32
    return %arg0, %c0_i32 : i32, i32
  }
  func.func @transform_2(%arg0: i32, %arg1: i32) -> (i32, i32) {
    %c0_i32 = arith.constant 0 : i32
    %c0_i32_0 = arith.constant 0 : i32
    %c0_i32_1 = arith.constant 0 : i32
    return %c0_i32, %c0_i32_0 : i32, i32
  }
  func.func @transform_3(%arg0: i32, %arg1: i32) -> (i32, i32, i32) {
    %c0_i32 = arith.constant 0 : i32
    %c0_i32_0 = arith.constant 0 : i32
    return %arg1, %arg0, %c0_i32 : i32, i32, i32
  }
}

</mosaic_0001>

<llo_original>
// kernel: _gru_sequence_fwd.1
$region0: #{_gru_sequence_fwd.1}
  #allocation0 [shape = 'u32[]', space=smem, size = 0x4, offset = 0x4, fixed_abs, tag = 'smem constant byte address 0x4 - core index']
  #allocation1 [shape = 'u32[72,128]{1,0:T(1,128)}', space=vmem, size = 0x9000, scoped, tag = 'internal scratch']
  #allocation2 [shape = 'f32[256,128]{1,0:T(8,128)}', space=vmem, size = 0x20000, scoped, tag = 'scratch operand']
  %s0 = inlined_call_operand.vmem [shape: f32[1,256,384], index: 0, kind: input, shape index: {}]
  %s1 = inlined_call_operand.vmem [shape: f32[256,128], index: 1, kind: input, shape index: {}]
  %s2 = inlined_call_operand.vmem [shape: f32[128,384], index: 2, kind: input, shape index: {}]
  %s3 = inlined_call_operand.vmem [shape: f32[1,256,128], index: 3, kind: output, shape index: {}]
  %s4 = sld [smem:[#allocation0]]
  $region26: #{_gru_sequence_fwd.1} parent=0
    _
  %s6 = ssub.s32 1, %s4
  %s7 = scalar_select 0, %s6, %s4
  // Predicated region
  $region2: #{_gru_sequence_fwd.1} parent=0 // pred_check
    _
  $region3: #{_gru_sequence_fwd.1} parent=0 // pred_check_branch
    %9 = sbr.rel (0) target = $region5
  $region4: #{_gru_sequence_fwd.1} parent=0 // pred_region
    _
  $region5: #{_gru_sequence_fwd.1} parent=0 // pred_fallthru
    _
  // Predicated region
  $region6: #{_gru_sequence_fwd.1} parent=0 // pred_check
    _
  $region7: #{_gru_sequence_fwd.1} parent=0 // pred_check_branch
    %11 = sbr.rel (0) target = $region9
  $region8: #{_gru_sequence_fwd.1} parent=0 // pred_region
    _
  $region9: #{_gru_sequence_fwd.1} parent=0 // pred_fallthru
    _
  // Predicated region
  $region10: #{_gru_sequence_fwd.1} parent=0 // pred_check
    _
  $region11: #{_gru_sequence_fwd.1} parent=0 // pred_check_branch
    %13 = sbr.rel (0) target = $region13
  $region12: #{_gru_sequence_fwd.1} parent=0 // pred_region
    _
  $region13: #{_gru_sequence_fwd.1} parent=0 // pred_fallthru
    _
  %p14 = scmp.eq.s32.totalorder 0, 0
  // Predicated region
  $region14: #{_gru_sequence_fwd.1} parent=0 // pred_check
    %p15 = pneg %p14
  $region15: #{_gru_sequence_fwd.1} parent=0 // pred_check_branch
    %17 = sbr.rel (%p15) target = $region17
  $region16: #{_gru_sequence_fwd.1} parent=0 // pred_region
    %v18 = vld [vmem:[%s1] sm:$0xff]
    %v19 = vld [vmem:[%s1 + $0x8] sm:$0xff]
    %v20 = vld [vmem:[%s1 + $0x10] sm:$0xff]
    %v21 = vld [vmem:[%s1 + $0x18] sm:$0xff]
    %v22 = vld [vmem:[%s1 + $0x20] sm:$0xff]
    %v23 = vld [vmem:[%s1 + $0x28] sm:$0xff]
    %v24 = vld [vmem:[%s1 + $0x30] sm:$0xff]
    %v25 = vld [vmem:[%s1 + $0x38] sm:$0xff]
    %v26 = vld [vmem:[%s1 + $0x40] sm:$0xff]
    %v27 = vld [vmem:[%s1 + $0x48] sm:$0xff]
    %v28 = vld [vmem:[%s1 + $0x50] sm:$0xff]
    %v29 = vld [vmem:[%s1 + $0x58] sm:$0xff]
    %v30 = vld [vmem:[%s1 + $0x60] sm:$0xff]
    %v31 = vld [vmem:[%s1 + $0x68] sm:$0xff]
    %v32 = vld [vmem:[%s1 + $0x70] sm:$0xff]
    %v33 = vld [vmem:[%s1 + $0x78] sm:$0xff]
    %v34 = vld [vmem:[%s1 + $0x80] sm:$0xff]
    %v35 = vld [vmem:[%s1 + $0x88] sm:$0xff]
    %v36 = vld [vmem:[%s1 + $0x90] sm:$0xff]
    %v37 = vld [vmem:[%s1 + $0x98] sm:$0xff]
    %v38 = vld [vmem:[%s1 + $0xa0] sm:$0xff]
    %v39 = vld [vmem:[%s1 + $0xa8] sm:$0xff]
    %v40 = vld [vmem:[%s1 + $0xb0] sm:$0xff]
    %v41 = vld [vmem:[%s1 + $0xb8] sm:$0xff]
    %v42 = vld [vmem:[%s1 + $0xc0] sm:$0xff]
    %v43 = vld [vmem:[%s1 + $0xc8] sm:$0xff]
    %v44 = vld [vmem:[%s1 + $0xd0] sm:$0xff]
    %v45 = vld [vmem:[%s1 + $0xd8] sm:$0xff]
    %v46 = vld [vmem:[%s1 + $0xe0] sm:$0xff]
    %v47 = vld [vmem:[%s1 + $0xe8] sm:$0xff]
    %v48 = vld [vmem:[%s1 + $0xf0] sm:$0xff]
    %v49 = vld [vmem:[%s1 + $0xf8] sm:$0xff]
    %50 = vst [vmem:[#allocation2] sm:$0xff] %v18
    %51 = vst [vmem:[#allocation2 + $0x8] sm:$0xff] %v19
    %52 = vst [vmem:[#allocation2 + $0x10] sm:$0xff] %v20
    %53 = vst [vmem:[#allocation2 + $0x18] sm:$0xff] %v21
    %54 = vst [vmem:[#allocation2 + $0x20] sm:$0xff] %v22
    %55 = vst [vmem:[#allocation2 + $0x28] sm:$0xff] %v23
    %56 = vst [vmem:[#allocation2 + $0x30] sm:$0xff] %v24
    %57 = vst [vmem:[#allocation2 + $0x38] sm:$0xff] %v25
    %58 = vst [vmem:[#allocation2 + $0x40] sm:$0xff] %v26
    %59 = vst [vmem:[#allocation2 + $0x48] sm:$0xff] %v27
    %60 = vst [vmem:[#allocation2 + $0x50] sm:$0xff] %v28
    %61 = vst [vmem:[#allocation2 + $0x58] sm:$0xff] %v29
    %62 = vst [vmem:[#allocation2 + $0x60] sm:$0xff] %v30
    %63 = vst [vmem:[#allocation2 + $0x68] sm:$0xff] %v31
    %64 = vst [vmem:[#allocation2 + $0x70] sm:$0xff] %v32
    %65 = vst [vmem:[#allocation2 + $0x78] sm:$0xff] %v33
    %66 = vst [vmem:[#allocation2 + $0x80] sm:$0xff] %v34
    %67 = vst [vmem:[#allocation2 + $0x88] sm:$0xff] %v35
    %68 = vst [vmem:[#allocation2 + $0x90] sm:$0xff] %v36
    %69 = vst [vmem:[#allocation2 + $0x98] sm:$0xff] %v37
    %70 = vst [vmem:[#allocation2 + $0xa0] sm:$0xff] %v38
    %71 = vst [vmem:[#allocation2 + $0xa8] sm:$0xff] %v39
    %72 = vst [vmem:[#allocation2 + $0xb0] sm:$0xff] %v40
    %73 = vst [vmem:[#allocation2 + $0xb8] sm:$0xff] %v41
    %74 = vst [vmem:[#allocation2 + $0xc0] sm:$0xff] %v42
    %75 = vst [vmem:[#allocation2 + $0xc8] sm:$0xff] %v43
    %76 = vst [vmem:[#allocation2 + $0xd0] sm:$0xff] %v44
    %77 = vst [vmem:[#allocation2 + $0xd8] sm:$0xff] %v45
    %78 = vst [vmem:[#allocation2 + $0xe0] sm:$0xff] %v46
    %79 = vst [vmem:[#allocation2 + $0xe8] sm:$0xff] %v47
    %80 = vst [vmem:[#allocation2 + $0xf0] sm:$0xff] %v48
    %81 = vst [vmem:[#allocation2 + $0xf8] sm:$0xff] %v49
  $region17: #{_gru_sequence_fwd.1} parent=0 // pred_fallthru
    _
  %v82 = vld [vmem:[#allocation2] sm:$0xff]
  %v83 = vld [vmem:[#allocation2 + $0x8] sm:$0xff]
  %v84 = vld [vmem:[#allocation2 + $0x10] sm:$0xff]
  %v85 = vld [vmem:[#allocation2 + $0x18] sm:$0xff]
  %v86 = vld [vmem:[#allocation2 + $0x20] sm:$0xff]
  %v87 = vld [vmem:[#allocation2 + $0x28] sm:$0xff]
  %v88 = vld [vmem:[#allocation2 + $0x30] sm:$0xff]
  %v89 = vld [vmem:[#allocation2 + $0x38] sm:$0xff]
  %v90 = vld [vmem:[#allocation2 + $0x40] sm:$0xff]
  %v91 = vld [vmem:[#allocation2 + $0x48] sm:$0xff]
  %v92 = vld [vmem:[#allocation2 + $0x50] sm:$0xff]
  %v93 = vld [vmem:[#allocation2 + $0x58] sm:$0xff]
  %v94 = vld [vmem:[#allocation2 + $0x60] sm:$0xff]
  %v95 = vld [vmem:[#allocation2 + $0x68] sm:$0xff]
  %v96 = vld [vmem:[#allocation2 + $0x70] sm:$0xff]
  %v97 = vld [vmem:[#allocation2 + $0x78] sm:$0xff]
  %v98 = vld [vmem:[#allocation2 + $0x80] sm:$0xff]
  %v99 = vld [vmem:[#allocation2 + $0x88] sm:$0xff]
  %v100 = vld [vmem:[#allocation2 + $0x90] sm:$0xff]
  %v101 = vld [vmem:[#allocation2 + $0x98] sm:$0xff]
  %v102 = vld [vmem:[#allocation2 + $0xa0] sm:$0xff]
  %v103 = vld [vmem:[#allocation2 + $0xa8] sm:$0xff]
  %v104 = vld [vmem:[#allocation2 + $0xb0] sm:$0xff]
  %v105 = vld [vmem:[#allocation2 + $0xb8] sm:$0xff]
  %v106 = vld [vmem:[#allocation2 + $0xc0] sm:$0xff]
  %v107 = vld [vmem:[#allocation2 + $0xc8] sm:$0xff]
  %v108 = vld [vmem:[#allocation2 + $0xd0] sm:$0xff]
  %v109 = vld [vmem:[#allocation2 + $0xd8] sm:$0xff]
  %v110 = vld [vmem:[#allocation2 + $0xe0] sm:$0xff]
  %v111 = vld [vmem:[#allocation2 + $0xe8] sm:$0xff]
  %v112 = vld [vmem:[#allocation2 + $0xf0] sm:$0xff]
  %v113 = vld [vmem:[#allocation2 + $0xf8] sm:$0xff]
  %v114 = vld [vmem:[%s2] sm:$0xff]
  %v115 = vld [vmem:[%s2 + $0x18] sm:$0xff]
  %v116 = vld [vmem:[%s2 + $0x30] sm:$0xff]
  %v117 = vld [vmem:[%s2 + $0x48] sm:$0xff]
  %v118 = vld [vmem:[%s2 + $0x60] sm:$0xff]
  %v119 = vld [vmem:[%s2 + $0x78] sm:$0xff]
  %v120 = vld [vmem:[%s2 + $0x90] sm:$0xff]
  %v121 = vld [vmem:[%s2 + $0xa8] sm:$0xff]
  %v122 = vld [vmem:[%s2 + $0xc0] sm:$0xff]
  %v123 = vld [vmem:[%s2 + $0xd8] sm:$0xff]
  %v124 = vld [vmem:[%s2 + $0xf0] sm:$0xff]
  %v125 = vld [vmem:[%s2 + $0x108] sm:$0xff]
  %v126 = vld [vmem:[%s2 + $0x120] sm:$0xff]
  %v127 = vld [vmem:[%s2 + $0x138] sm:$0xff]
  %v128 = vld [vmem:[%s2 + $0x150] sm:$0xff]
  %v129 = vld [vmem:[%s2 + $0x168] sm:$0xff]
  %130 = vmatpush.msra.mxu0 %v129
  %131 = vmatpush.msra.mxu0 %v128
  %132 = vmatpush.msra.mxu0 %v127
  %133 = vmatpush.msra.mxu0 %v126
  %134 = vmatpush.msra.mxu0 %v125
  %135 = vmatpush.msra.mxu0 %v124
  %136 = vmatpush.msra.mxu0 %v123
  %137 = vmatpush.msra.mxu0 %v122
  %138 = vmatpush.msra.mxu0 %v121
  %139 = vmatpush.msra.mxu0 %v120
  %140 = vmatpush.msra.mxu0 %v119
  %141 = vmatpush.msra.mxu0 %v118
  %142 = vmatpush.msra.mxu0 %v117
  %143 = vmatpush.msra.mxu0 %v116
  %144 = vmatpush.msra.mxu0 %v115
  %145 = vmatpush.msra.mxu0 %v114
  %146 = vmatmul.f32.gmra.mxu0 %v82
  %v147 = vpop.f32.mrf.mxu0
  %v148 = vadd.f32 0.0, %v147
  %149 = vmatmul.f32.gmra.mxu0 %v83
  %v150 = vpop.f32.mrf.mxu0
  %v151 = vadd.f32 0.0, %v150
  %152 = vmatmul.f32.gmra.mxu0 %v84
  %v153 = vpop.f32.mrf.mxu0
  %v154 = vadd.f32 0.0, %v153
  %155 = vmatmul.f32.gmra.mxu0 %v85
  %v156 = vpop.f32.mrf.mxu0
  %v157 = vadd.f32 0.0, %v156
  %158 = vmatmul.f32.gmra.mxu0 %v86
  %v159 = vpop.f32.mrf.mxu0
  %v160 = vadd.f32 0.0, %v159
  %161 = vmatmul.f32.gmra.mxu0 %v87
  %v162 = vpop.f32.mrf.mxu0
  %v163 = vadd.f32 0.0, %v162
  %164 = vmatmul.f32.gmra.mxu0 %v88
  %v165 = vpop.f32.mrf.mxu0
  %v166 = vadd.f32 0.0, %v165
  %167 = vmatmul.f32.gmra.mxu0 %v89
  %v168 = vpop.f32.mrf.mxu0
  %v169 = vadd.f32 0.0, %v168
  %170 = vmatmul.f32.gmra.mxu0 %v90
  %v171 = vpop.f32.mrf.mxu0
  %v172 = vadd.f32 0.0, %v171
  %173 = vmatmul.f32.gmra.mxu0 %v91
  %v174 = vpop.f32.mrf.mxu0
  %v175 = vadd.f32 0.0, %v174
  %176 = vmatmul.f32.gmra.mxu0 %v92
  %v177 = vpop.f32.mrf.mxu0
  %v178 = vadd.f32 0.0, %v177
  %179 = vmatmul.f32.gmra.mxu0 %v93
  %v180 = vpop.f32.mrf.mxu0
  %v181 = vadd.f32 0.0, %v180
  %182 = vmatmul.f32.gmra.mxu0 %v94
  %v183 = vpop.f32.mrf.mxu0
  %v184 = vadd.f32 0.0, %v183
  %185 = vmatmul.f32.gmra.mxu0 %v95
  %v186 = vpop.f32.mrf.mxu0
  %v187 = vadd.f32 0.0, %v186
  %188 = vmatmul.f32.gmra.mxu0 %v96
  %v189 = vpop.f32.mrf.mxu0
  %v190 = vadd.f32 0.0, %v189
  %191 = vmatmul.f32.gmra.mxu0 %v97
  %v192 = vpop.f32.mrf.mxu0
  %v193 = vadd.f32 0.0, %v192
  %194 = vmatmul.f32.gmra.mxu0 %v98
  %v195 = vpop.f32.mrf.mxu0
  %v196 = vadd.f32 0.0, %v195
  %197 = vmatmul.f32.gmra.mxu0 %v99
  %v198 = vpop.f32.mrf.mxu0
  %v199 = vadd.f32 0.0, %v198
  %200 = vmatmul.f32.gmra.mxu0 %v100
  %v201 = vpop.f32.mrf.mxu0
  %v202 = vadd.f32 0.0, %v201
  %203 = vmatmul.f32.gmra.mxu0 %v101
  %v204 = vpop.f32.mrf.mxu0
  %v205 = vadd.f32 0.0, %v204
  %206 = vmatmul.f32.gmra.mxu0 %v102
  %v207 = vpop.f32.mrf.mxu0
  %v208 = vadd.f32 0.0, %v207
  %209 = vmatmul.f32.gmra.mxu0 %v103
  %v210 = vpop.f32.mrf.mxu0
  %v211 = vadd.f32 0.0, %v210
  %212 = vmatmul.f32.gmra.mxu0 %v104
  %v213 = vpop.f32.mrf.mxu0
  %v214 = vadd.f32 0.0, %v213
  %215 = vmatmul.f32.gmra.mxu0 %v105
  %v216 = vpop.f32.mrf.mxu0
  %v217 = vadd.f32 0.0, %v216
  %218 = vmatmul.f32.gmra.mxu0 %v106
  %v219 = vpop.f32.mrf.mxu0
  %v220 = vadd.f32 0.0, %v219
  %221 = vmatmul.f32.gmra.mxu0 %v107
  %v222 = vpop.f32.mrf.mxu0
  %v223 = vadd.f32 0.0, %v222
  %224 = vmatmul.f32.gmra.mxu0 %v108
  %v225 = vpop.f32.mrf.mxu0
  %v226 = vadd.f32 0.0, %v225
  %227 = vmatmul.f32.gmra.mxu0 %v109
  %v228 = vpop.f32.mrf.mxu0
  %v229 = vadd.f32 0.0, %v228
  %230 = vmatmul.f32.gmra.mxu0 %v110
  %v231 = vpop.f32.mrf.mxu0
  %v232 = vadd.f32 0.0, %v231
  %233 = vmatmul.f32.gmra.mxu0 %v111
  %v234 = vpop.f32.mrf.mxu0
  %v235 = vadd.f32 0.0, %v234
  %236 = vmatmul.f32.gmra.mxu0 %v112
  %v237 = vpop.f32.mrf.mxu0
  %v238 = vadd.f32 0.0, %v237
  %239 = vmatmul.f32.gmra.mxu0 %v113
  %v240 = vpop.f32.mrf.mxu0
  %v241 = vadd.f32 0.0, %v240
  %242 = vdwg.mxu0
  %v243 = vld [vmem:[%s0] sm:$0xff]
  %v244 = vld [vmem:[%s0 + $0x18] sm:$0xff]
  %v245 = vld [vmem:[%s0 + $0x30] sm:$0xff]
  %v246 = vld [vmem:[%s0 + $0x48] sm:$0xff]
  %v247 = vld [vmem:[%s0 + $0x60] sm:$0xff]
  %v248 = vld [vmem:[%s0 + $0x78] sm:$0xff]
  %v249 = vld [vmem:[%s0 + $0x90] sm:$0xff]
  %v250 = vld [vmem:[%s0 + $0xa8] sm:$0xff]
  %v251 = vld [vmem:[%s0 + $0xc0] sm:$0xff]
  %v252 = vld [vmem:[%s0 + $0xd8] sm:$0xff]
  %v253 = vld [vmem:[%s0 + $0xf0] sm:$0xff]
  %v254 = vld [vmem:[%s0 + $0x108] sm:$0xff]
  %v255 = vld [vmem:[%s0 + $0x120] sm:$0xff]
  %v256 = vld [vmem:[%s0 + $0x138] sm:$0xff]
  %v257 = vld [vmem:[%s0 + $0x150] sm:$0xff]
  %v258 = vld [vmem:[%s0 + $0x168] sm:$0xff]
  %v259 = vld [vmem:[%s0 + $0x180] sm:$0xff]
  %v260 = vld [vmem:[%s0 + $0x198] sm:$0xff]
  %v261 = vld [vmem:[%s0 + $0x1b0] sm:$0xff]
  %v262 = vld [vmem:[%s0 + $0x1c8] sm:$0xff]
  %v263 = vld [vmem:[%s0 + $0x1e0] sm:$0xff]
  %v264 = vld [vmem:[%s0 + $0x1f8] sm:$0xff]
  %v265 = vld [vmem:[%s0 + $0x210] sm:$0xff]
  %v266 = vld [vmem:[%s0 + $0x228] sm:$0xff]
  %v267 = vld [vmem:[%s0 + $0x240] sm:$0xff]
  %v268 = vld [vmem:[%s0 + $0x258] sm:$0xff]
  %v269 = vld [vmem:[%s0 + $0x270] sm:$0xff]
  %v270 = vld [vmem:[%s0 + $0x288] sm:$0xff]
  %v271 = vld [vmem:[%s0 + $0x2a0] sm:$0xff]
  %v272 = vld [vmem:[%s0 + $0x2b8] sm:$0xff]
  %v273 = vld [vmem:[%s0 + $0x2d0] sm:$0xff]
  %v274 = vld [vmem:[%s0 + $0x2e8] sm:$0xff]
  %v275 = vadd.f32 %v243, %v148
  %v276 = vadd.f32 %v244, %v151
  %v277 = vadd.f32 %v245, %v154
  %v278 = vadd.f32 %v246, %v157
  %v279 = vadd.f32 %v247, %v160
  %v280 = vadd.f32 %v248, %v163
  %v281 = vadd.f32 %v249, %v166
  %v282 = vadd.f32 %v250, %v169
  %v283 = vadd.f32 %v251, %v172
  %v284 = vadd.f32 %v252, %v175
  %v285 = vadd.f32 %v253, %v178
  %v286 = vadd.f32 %v254, %v181
  %v287 = vadd.f32 %v255, %v184
  %v288 = vadd.f32 %v256, %v187
  %v289 = vadd.f32 %v257, %v190
  %v290 = vadd.f32 %v258, %v193
  %v291 = vadd.f32 %v259, %v196
  %v292 = vadd.f32 %v260, %v199
  %v293 = vadd.f32 %v261, %v202
  %v294 = vadd.f32 %v262, %v205
  %v295 = vadd.f32 %v263, %v208
  %v296 = vadd.f32 %v264, %v211
  %v297 = vadd.f32 %v265, %v214
  %v298 = vadd.f32 %v266, %v217
  %v299 = vadd.f32 %v267, %v220
  %v300 = vadd.f32 %v268, %v223
  %v301 = vadd.f32 %v269, %v226
  %v302 = vadd.f32 %v270, %v229
  %v303 = vadd.f32 %v271, %v232
  %v304 = vadd.f32 %v272, %v235
  %v305 = vadd.f32 %v273, %v238
  %v306 = vadd.f32 %v274, %v241
  %v307 = vxor.u32 %v275, 2147483648
  %v308 = vxor.u32 %v276, 2147483648
  %v309 = vxor.u32 %v277, 2147483648
  %v310 = vxor.u32 %v278, 2147483648
  %v311 = vxor.u32 %v279, 2147483648
  %v312 = vxor.u32 %v280, 2147483648
  %v313 = vxor.u32 %v281, 2147483648
  %v314 = vxor.u32 %v282, 2147483648
  %v315 = vxor.u32 %v283, 2147483648
  %v316 = vxor.u32 %v284, 2147483648
  %v317 = vxor.u32 %v285, 2147483648
  %v318 = vxor.u32 %v286, 2147483648
  %v319 = vxor.u32 %v287, 2147483648
  %v320 = vxor.u32 %v288, 2147483648
  %v321 = vxor.u32 %v289, 2147483648
  %v322 = vxor.u32 %v290, 2147483648
  %v323 = vxor.u32 %v291, 2147483648
  %v324 = vxor.u32 %v292, 2147483648
  %v325 = vxor.u32 %v293, 2147483648
  %v326 = vxor.u32 %v294, 2147483648
  %v327 = vxor.u32 %v295, 2147483648
  %v328 = vxor.u32 %v296, 2147483648
  %v329 = vxor.u32 %v297, 2147483648
  %v330 = vxor.u32 %v298, 2147483648
  %v331 = vxor.u32 %v299, 2147483648
  %v332 = vxor.u32 %v300, 2147483648
  %v333 = vxor.u32 %v301, 2147483648
  %v334 = vxor.u32 %v302, 2147483648
  %v335 = vxor.u32 %v303, 2147483648
  %v336 = vxor.u32 %v304, 2147483648
  %v337 = vxor.u32 %v305, 2147483648
  %v338 = vxor.u32 %v306, 2147483648
  %v339 = vmul.f32 %v307, 1.442695
  %v340 = vpow.pop %v339
  %v341 = vmul.f32 %v308, 1.442695
  %v342 = vpow.pop %v341
  %v343 = vmul.f32 %v309, 1.442695
  %v344 = vpow.pop %v343
  %v345 = vmul.f32 %v310, 1.442695
  %v346 = vpow.pop %v345
  %v347 = vmul.f32 %v311, 1.442695
  %v348 = vpow.pop %v347
  %v349 = vmul.f32 %v312, 1.442695
  %v350 = vpow.pop %v349
  %v351 = vmul.f32 %v313, 1.442695
  %v352 = vpow.pop %v351
  %v353 = vmul.f32 %v314, 1.442695
  %v354 = vpow.pop %v353
  %v355 = vmul.f32 %v315, 1.442695
  %v356 = vpow.pop %v355
  %v357 = vmul.f32 %v316, 1.442695
  %v358 = vpow.pop %v357
  %v359 = vmul.f32 %v317, 1.442695
  %v360 = vpow.pop %v359
  %v361 = vmul.f32 %v318, 1.442695
  %v362 = vpow.pop %v361
  %v363 = vmul.f32 %v319, 1.442695
  %v364 = vpow.pop %v363
  %v365 = vmul.f32 %v320, 1.442695
  %v366 = vpow.pop %v365
  %v367 = vmul.f32 %v321, 1.442695
  %v368 = vpow.pop %v367
  %v369 = vmul.f32 %v322, 1.442695
  %v370 = vpow.pop %v369
  %v371 = vmul.f32 %v323, 1.442695
  %v372 = vpow.pop %v371
  %v373 = vmul.f32 %v324, 1.442695
  %v374 = vpow.pop %v373
  %v375 = vmul.f32 %v325, 1.442695
  %v376 = vpow.pop %v375
  %v377 = vmul.f32 %v326, 1.442695
  %v378 = vpow.pop %v377
  %v379 = vmul.f32 %v327, 1.442695
  %v380 = vpow.pop %v379
  %v381 = vmul.f32 %v328, 1.442695
  %v382 = vpow.pop %v381
  %v383 = vmul.f32 %v329, 1.442695
  %v384 = vpow.pop %v383
  %v385 = vmul.f32 %v330, 1.442695
  %v386 = vpow.pop %v385
  %v387 = vmul.f32 %v331, 1.442695
  %v388 = vpow.pop %v387
  %v389 = vmul.f32 %v332, 1.442695
  %v390 = vpow.pop %v389
  %v391 = vmul.f32 %v333, 1.442695
  %v392 = vpow.pop %v391
  %v393 = vmul.f32 %v334, 1.442695
  %v394 = vpow.pop %v393
  %v395 = vmul.f32 %v335, 1.442695
  %v396 = vpow.pop %v395
  %v397 = vmul.f32 %v336, 1.442695
  %v398 = vpow.pop %v397
  %v399 = vmul.f32 %v337, 1.442695
  %v400 = vpow.pop %v399
  %v401 = vmul.f32 %v338, 1.442695
  %v402 = vpow.pop %v401
  %v403 = vadd.f32 %v340, 1.0
  %v404 = vadd.f32 %v342, 1.0
  %v405 = vadd.f32 %v344, 1.0
  %v406 = vadd.f32 %v346, 1.0
  %v407 = vadd.f32 %v348, 1.0
  %v408 = vadd.f32 %v350, 1.0
  %v409 = vadd.f32 %v352, 1.0
  %v410 = vadd.f32 %v354, 1.0
  %v411 = vadd.f32 %v356, 1.0
  %v412 = vadd.f32 %v358, 1.0
  %v413 = vadd.f32 %v360, 1.0
  %v414 = vadd.f32 %v362, 1.0
  %v415 = vadd.f32 %v364, 1.0
  %v416 = vadd.f32 %v366, 1.0
  %v417 = vadd.f32 %v368, 1.0
  %v418 = vadd.f32 %v370, 1.0
  %v419 = vadd.f32 %v372, 1.0
  %v420 = vadd.f32 %v374, 1.0
  %v421 = vadd.f32 %v376, 1.0
  %v422 = vadd.f32 %v378, 1.0
  %v423 = vadd.f32 %v380, 1.0
  %v424 = vadd.f32 %v382, 1.0
  %v425 = vadd.f32 %v384, 1.0
  %v426 = vadd.f32 %v386, 1.0
  %v427 = vadd.f32 %v388, 1.0
  %v428 = vadd.f32 %v390, 1.0
  %v429 = vadd.f32 %v392, 1.0
  %v430 = vadd.f32 %v394, 1.0
  %v431 = vadd.f32 %v396, 1.0
  %v432 = vadd.f32 %v398, 1.0
  %v433 = vadd.f32 %v400, 1.0
  %v434 = vadd.f32 %v402, 1.0
  %v435 = vrcp.pop %v403
  %v436 = vmul.f32 %v403, %v435
  %v437 = vsub.f32 1.0, %v436
  %v438 = vmul.f32 %v435, %v437
  %v439 = vadd.f32 %v435, %v438
  %vm440 = vweird.f32 %v403
  %vm441 = vweird.f32 %v435
  %vm442 = vmor %vm440, %vm441
  %v443 = vsel %vm442, %v435, %v439
  %v444 = vand.u32 2147483647, %v403
  %vm445 = vcmp.eq.f32.partialorder %v444, 8.507059e+37
  %v446 = vand.u32 %v403, 2147483648
  %v447 = vor.u32 1.1754944e-38, %v446
  %v448 = vsel %vm445, %v447, %v443
  %v449 = vmul.f32 1.0, %v448
  %v450 = vrcp.pop %v404
  %v451 = vmul.f32 %v404, %v450
  %v452 = vsub.f32 1.0, %v451
  %v453 = vmul.f32 %v450, %v452
  %v454 = vadd.f32 %v450, %v453
  %vm455 = vweird.f32 %v404
  %vm456 = vweird.f32 %v450
  %vm457 = vmor %vm455, %vm456
  %v458 = vsel %vm457, %v450, %v454
  %v459 = vand.u32 2147483647, %v404
  %vm460 = vcmp.eq.f32.partialorder %v459, 8.507059e+37
  %v461 = vand.u32 %v404, 2147483648
  %v462 = vor.u32 1.1754944e-38, %v461
  %v463 = vsel %vm460, %v462, %v458
  %v464 = vmul.f32 1.0, %v463
  %v465 = vrcp.pop %v405
  %v466 = vmul.f32 %v405, %v465
  %v467 = vsub.f32 1.0, %v466
  %v468 = vmul.f32 %v465, %v467
  %v469 = vadd.f32 %v465, %v468
  %vm470 = vweird.f32 %v405
  %vm471 = vweird.f32 %v465
  %vm472 = vmor %vm470, %vm471
  %v473 = vsel %vm472, %v465, %v469
  %v474 = vand.u32 2147483647, %v405
  %vm475 = vcmp.eq.f32.partialorder %v474, 8.507059e+37
  %v476 = vand.u32 %v405, 2147483648
  %v477 = vor.u32 1.1754944e-38, %v476
  %v478 = vsel %vm475, %v477, %v473
  %v479 = vmul.f32 1.0, %v478
  %v480 = vrcp.pop %v406
  %v481 = vmul.f32 %v406, %v480
  %v482 = vsub.f32 1.0, %v481
  %v483 = vmul.f32 %v480, %v482
  %v484 = vadd.f32 %v480, %v483
  %vm485 = vweird.f32 %v406
  %vm486 = vweird.f32 %v480
  %vm487 = vmor %vm485, %vm486
  %v488 = vsel %vm487, %v480, %v484
  %v489 = vand.u32 2147483647, %v406
  %vm490 = vcmp.eq.f32.partialorder %v489, 8.507059e+37
  %v491 = vand.u32 %v406, 2147483648
  %v492 = vor.u32 1.1754944e-38, %v491
  %v493 = vsel %vm490, %v492, %v488
  %v494 = vmul.f32 1.0, %v493
  %v495 = vrcp.pop %v407
  %v496 = vmul.f32 %v407, %v495
  %v497 = vsub.f32 1.0, %v496
  %v498 = vmul.f32 %v495, %v497
  %v499 = vadd.f32 %v495, %v498
  %vm500 = vweird.f32 %v407
  %vm501 = vweird.f32 %v495
  %vm502 = vmor %vm500, %vm501
  %v503 = vsel %vm502, %v495, %v499
  %v504 = vand.u32 2147483647, %v407
  %vm505 = vcmp.eq.f32.partialorder %v504, 8.507059e+37
  %v506 = vand.u32 %v407, 2147483648
  %v507 = vor.u32 1.1754944e-38, %v506
  %v508 = vsel %vm505, %v507, %v503
  %v509 = vmul.f32 1.0, %v508
  %v510 = vrcp.pop %v408
  %v511 = vmul.f32 %v408, %v510
  %v512 = vsub.f32 1.0, %v511
  %v513 = vmul.f32 %v510, %v512
  %v514 = vadd.f32 %v510, %v513
  %vm515 = vweird.f32 %v408
  %vm516 = vweird.f32 %v510
  %vm517 = vmor %vm515, %vm516
  %v518 = vsel %vm517, %v510, %v514
  %v519 = vand.u32 2147483647, %v408
  %vm520 = vcmp.eq.f32.partialorder %v519, 8.507059e+37
  %v521 = vand.u32 %v408, 2147483648
  %v522 = vor.u32 1.1754944e-38, %v521
  %v523 = vsel %vm520, %v522, %v518
  %v524 = vmul.f32 1.0, %v523
  %v525 = vrcp.pop %v409
  %v526 = vmul.f32 %v409, %v525
  %v527 = vsub.f32 1.0, %v526
  %v528 = vmul.f32 %v525, %v527
  %v529 = vadd.f32 %v525, %v528
  %vm530 = vweird.f32 %v409
  %vm531 = vweird.f32 %v525
  %vm532 = vmor %vm530, %vm531
  %v533 = vsel %vm532, %v525, %v529
  %v534 = vand.u32 2147483647, %v409
  %vm535 = vcmp.eq.f32.partialorder %v534, 8.507059e+37
  %v536 = vand.u32 %v409, 2147483648
  %v537 = vor.u32 1.1754944e-38, %v536
  %v538 = vsel %vm535, %v537, %v533
  %v539 = vmul.f32 1.0, %v538
  %v540 = vrcp.pop %v410
  %v541 = vmul.f32 %v410, %v540
  %v542 = vsub.f32 1.0, %v541
  %v543 = vmul.f32 %v540, %v542
  %v544 = vadd.f32 %v540, %v543
  %vm545 = vweird.f32 %v410
  %vm546 = vweird.f32 %v540
  %vm547 = vmor %vm545, %vm546
  %v548 = vsel %vm547, %v540, %v544
  %v549 = vand.u32 2147483647, %v410
  %vm550 = vcmp.eq.f32.partialorder %v549, 8.507059e+37
  %v551 = vand.u32 %v410, 2147483648
  %v552 = vor.u32 1.1754944e-38, %v551
  %v553 = vsel %vm550, %v552, %v548
  %v554 = vmul.f32 1.0, %v553
  %v555 = vrcp.pop %v411
  %v556 = vmul.f32 %v411, %v555
  %v557 = vsub.f32 1.0, %v556
  %v558 = vmul.f32 %v555, %v557
  %v559 = vadd.f32 %v555, %v558
  %vm560 = vweird.f32 %v411
  %vm561 = vweird.f32 %v555
  %vm562 = vmor %vm560, %vm561
  %v563 = vsel %vm562, %v555, %v559
  %v564 = vand.u32 2147483647, %v411
  %vm565 = vcmp.eq.f32.partialorder %v564, 8.507059e+37
  %v566 = vand.u32 %v411, 2147483648
  %v567 = vor.u32 1.1754944e-38, %v566
  %v568 = vsel %vm565, %v567, %v563
  %v569 = vmul.f32 1.0, %v568
  %v570 = vrcp.pop %v412
  %v571 = vmul.f32 %v412, %v570
  %v572 = vsub.f32 1.0, %v571
  %v573 = vmul.f32 %v570, %v572
  %v574 = vadd.f32 %v570, %v573
  %vm575 = vweird.f32 %v412
  %vm576 = vweird.f32 %v570
  %vm577 = vmor %vm575, %vm576
  %v578 = vsel %vm577, %v570, %v574
  %v579 = vand.u32 2147483647, %v412
  %vm580 = vcmp.eq.f32.partialorder %v579, 8.507059e+37
  %v581 = vand.u32 %v412, 2147483648
  %v582 = vor.u32 1.1754944e-38, %v581
  %v583 = vsel %vm580, %v582, %v578
  %v584 = vmul.f32 1.0, %v583
  %v585 = vrcp.pop %v413
  %v586 = vmul.f32 %v413, %v585
  %v587 = vsub.f32 1.0, %v586
  %v588 = vmul.f32 %v585, %v587
  %v589 = vadd.f32 %v585, %v588
  %vm590 = vweird.f32 %v413
  %vm591 = vweird.f32 %v585
  %vm592 = vmor %vm590, %vm591
  %v593 = vsel %vm592, %v585, %v589
  %v594 = vand.u32 2147483647, %v413
  %vm595 = vcmp.eq.f32.partialorder %v594, 8.507059e+37
  %v596 = vand.u32 %v413, 2147483648
  %v597 = vor.u32 1.1754944e-38, %v596
  %v598 = vsel %vm595, %v597, %v593
  %v599 = vmul.f32 1.0, %v598
  %v600 = vrcp.pop %v414
  %v601 = vmul.f32 %v414, %v600
  %v602 = vsub.f32 1.0, %v601
  %v603 = vmul.f32 %v600, %v602
  %v604 = vadd.f32 %v600, %v603
  %vm605 = vweird.f32 %v414
  %vm606 = vweird.f32 %v600
  %vm607 = vmor %vm605, %vm606
  %v608 = vsel %vm607, %v600, %v604
  %v609 = vand.u32 2147483647, %v414
  %vm610 = vcmp.eq.f32.partialorder %v609, 8.507059e+37
  %v611 = vand.u32 %v414, 2147483648
  %v612 = vor.u32 1.1754944e-38, %v611
  %v613 = vsel %vm610, %v612, %v608
  %v614 = vmul.f32 1.0, %v613
  %v615 = vrcp.pop %v415
  %v616 = vmul.f32 %v415, %v615
  %v617 = vsub.f32 1.0, %v616
  %v618 = vmul.f32 %v615, %v617
  %v619 = vadd.f32 %v615, %v618
  %vm620 = vweird.f32 %v415
  %vm621 = vweird.f32 %v615
  %vm622 = vmor %vm620, %vm621
  %v623 = vsel %vm622, %v615, %v619
  %v624 = vand.u32 2147483647, %v415
  %vm625 = vcmp.eq.f32.partialorder %v624, 8.507059e+37
  %v626 = vand.u32 %v415, 2147483648
  %v627 = vor.u32 1.1754944e-38, %v626
  %v628 = vsel %vm625, %v627, %v623
  %v629 = vmul.f32 1.0, %v628
  %v630 = vrcp.pop %v416
  %v631 = vmul.f32 %v416, %v630
  %v632 = vsub.f32 1.0, %v631
  %v633 = vmul.f32 %v630, %v632
  %v634 = vadd.f32 %v630, %v633
  %vm635 = vweird.f32 %v416
  %vm636 = vweird.f32 %v630
  %vm637 = vmor %vm635, %vm636
  %v638 = vsel %vm637, %v630, %v634
  %v639 = vand.u32 2147483647, %v416
  %vm640 = vcmp.eq.f32.partialorder %v639, 8.507059e+37
  %v641 = vand.u32 %v416, 2147483648
  %v642 = vor.u32 1.1754944e-38, %v641
  %v643 = vsel %vm640, %v642, %v638
  %v644 = vmul.f32 1.0, %v643
  %v645 = vrcp.pop %v417
  %v646 = vmul.f32 %v417, %v645
  %v647 = vsub.f32 1.0, %v646
  %v648 = vmul.f32 %v645, %v647
  %v649 = vadd.f32 %v645, %v648
  %vm650 = vweird.f32 %v417
  %vm651 = vweird.f32 %v645
  %vm652 = vmor %vm650, %vm651
  %v653 = vsel %vm652, %v645, %v649
  %v654 = vand.u32 2147483647, %v417
  %vm655 = vcmp.eq.f32.partialorder %v654, 8.507059e+37
  %v656 = vand.u32 %v417, 2147483648
  %v657 = vor.u32 1.1754944e-38, %v656
  %v658 = vsel %vm655, %v657, %v653
  %v659 = vmul.f32 1.0, %v658
  %v660 = vrcp.pop %v418
  %v661 = vmul.f32 %v418, %v660
  %v662 = vsub.f32 1.0, %v661
  %v663 = vmul.f32 %v660, %v662
  %v664 = vadd.f32 %v660, %v663
  %vm665 = vweird.f32 %v418
  %vm666 = vweird.f32 %v660
  %vm667 = vmor %vm665, %vm666
  %v668 = vsel %vm667, %v660, %v664
  %v669 = vand.u32 2147483647, %v418
  %vm670 = vcmp.eq.f32.partialorder %v669, 8.507059e+37
  %v671 = vand.u32 %v418, 2147483648
  %v672 = vor.u32 1.1754944e-38, %v671
  %v673 = vsel %vm670, %v672, %v668
  %v674 = vmul.f32 1.0, %v673
  %v675 = vrcp.pop %v419
  %v676 = vmul.f32 %v419, %v675
  %v677 = vsub.f32 1.0, %v676
  %v678 = vmul.f32 %v675, %v677
  %v679 = vadd.f32 %v675, %v678
  %vm680 = vweird.f32 %v419
  %vm681 = vweird.f32 %v675
  %vm682 = vmor %vm680, %vm681
  %v683 = vsel %vm682, %v675, %v679
  %v684 = vand.u32 2147483647, %v419
  %vm685 = vcmp.eq.f32.partialorder %v684, 8.507059e+37
  %v686 = vand.u32 %v419, 2147483648
  %v687 = vor.u32 1.1754944e-38, %v686
  %v688 = vsel %vm685, %v687, %v683
  %v689 = vmul.f32 1.0, %v688
  %v690 = vrcp.pop %v420
  %v691 = vmul.f32 %v420, %v690
  %v692 = vsub.f32 1.0, %v691
  %v693 = vmul.f32 %v690, %v692
  %v694 = vadd.f32 %v690, %v693
  %vm695 = vweird.f32 %v420
  %vm696 = vweird.f32 %v690
  %vm697 = vmor %vm695, %vm696
  %v698 = vsel %vm697, %v690, %v694
  %v699 = vand.u32 2147483647, %v420
  %vm700 = vcmp.eq.f32.partialorder %v699, 8.507059e+37
  %v701 = vand.u32 %v420, 2147483648
  %v702 = vor.u32 1.1754944e-38, %v701
  %v703 = vsel %vm700, %v702, %v698
  %v704 = vmul.f32 1.0, %v703
  %v705 = vrcp.pop %v421
  %v706 = vmul.f32 %v421, %v705
  %v707 = vsub.f32 1.0, %v706
  %v708 = vmul.f32 %v705, %v707
  %v709 = vadd.f32 %v705, %v708
  %vm710 = vweird.f32 %v421
  %vm711 = vweird.f32 %v705
  %vm712 = vmor %vm710, %vm711
  %v713 = vsel %vm712, %v705, %v709
  %v714 = vand.u32 2147483647, %v421
  %vm715 = vcmp.eq.f32.partialorder %v714, 8.507059e+37
  %v716 = vand.u32 %v421, 2147483648
  %v717 = vor.u32 1.1754944e-38, %v716
  %v718 = vsel %vm715, %v717, %v713
  %v719 = vmul.f32 1.0, %v718
  %v720 = vrcp.pop %v422
  %v721 = vmul.f32 %v422, %v720
  %v722 = vsub.f32 1.0, %v721
  %v723 = vmul.f32 %v720, %v722
  %v724 = vadd.f32 %v720, %v723
  %vm725 = vweird.f32 %v422
  %vm726 = vweird.f32 %v720
  %vm727 = vmor %vm725, %vm726
  %v728 = vsel %vm727, %v720, %v724
  %v729 = vand.u32 2147483647, %v422
  %vm730 = vcmp.eq.f32.partialorder %v729, 8.507059e+37
  %v731 = vand.u32 %v422, 2147483648
  %v732 = vor.u32 1.1754944e-38, %v731
  %v733 = vsel %vm730, %v732, %v728
  %v734 = vmul.f32 1.0, %v733
  %v735 = vrcp.pop %v423
  %v736 = vmul.f32 %v423, %v735
  %v737 = vsub.f32 1.0, %v736
  %v738 = vmul.f32 %v735, %v737
  %v739 = vadd.f32 %v735, %v738
  %vm740 = vweird.f32 %v423
  %vm741 = vweird.f32 %v735
  %vm742 = vmor %vm740, %vm741
  %v743 = vsel %vm742, %v735, %v739
  %v744 = vand.u32 2147483647, %v423
  %vm745 = vcmp.eq.f32.partialorder %v744, 8.507059e+37
  %v746 = vand.u32 %v423, 2147483648
  %v747 = vor.u32 1.1754944e-38, %v746
  %v748 = vsel %vm745, %v747, %v743
  %v749 = vmul.f32 1.0, %v748
  %v750 = vrcp.pop %v424
  %v751 = vmul.f32 %v424, %v750
  %v752 = vsub.f32 1.0, %v751
  %v753 = vmul.f32 %v750, %v752
  %v754 = vadd.f32 %v750, %v753
  %vm755 = vweird.f32 %v424
  %vm756 = vweird.f32 %v750
  %vm757 = vmor %vm755, %vm756
  %v758 = vsel %vm757, %v750, %v754
  %v759 = vand.u32 2147483647, %v424
  %vm760 = vcmp.eq.f32.partialorder %v759, 8.507059e+37
  %v761 = vand.u32 %v424, 2147483648
  %v762 = vor.u32 1.1754944e-38, %v761
  %v763 = vsel %vm760, %v762, %v758
  %v764 = vmul.f32 1.0, %v763
  %v765 = vrcp.pop %v425
  %v766 = vmul.f32 %v425, %v765
  %v767 = vsub.f32 1.0, %v766
  %v768 = vmul.f32 %v765, %v767
  %v769 = vadd.f32 %v765, %v768
  %vm770 = vweird.f32 %v425
  %vm771 = vweird.f32 %v765
  %vm772 = vmor %vm770, %vm771
  %v773 = vsel %vm772, %v765, %v769
  %v774 = vand.u32 2147483647, %v425
  %vm775 = vcmp.eq.f32.partialorder %v774, 8.507059e+37
  %v776 = vand.u32 %v425, 2147483648
  %v777 = vor.u32 1.1754944e-38, %v776
  %v778 = vsel %vm775, %v777, %v773
  %v779 = vmul.f32 1.0, %v778
  %v780 = vrcp.pop %v426
  %v781 = vmul.f32 %v426, %v780
  %v782 = vsub.f32 1.0, %v781
  %v783 = vmul.f32 %v780, %v782
  %v784 = vadd.f32 %v780, %v783
  %vm785 = vweird.f32 %v426
  %vm786 = vweird.f32 %v780
  %vm787 = vmor %vm785, %vm786
  %v788 = vsel %vm787, %v780, %v784
  %v789 = vand.u32 2147483647, %v426
  %vm790 = vcmp.eq.f32.partialorder %v789, 8.507059e+37
  %v791 = vand.u32 %v426, 2147483648
  %v792 = vor.u32 1.1754944e-38, %v791
  %v793 = vsel %vm790, %v792, %v788
  %v794 = vmul.f32 1.0, %v793
  %v795 = vrcp.pop %v427
  %v796 = vmul.f32 %v427, %v795
  %v797 = vsub.f32 1.0, %v796
  %v798 = vmul.f32 %v795, %v797
  %v799 = vadd.f32 %v795, %v798
  %vm800 = vweird.f32 %v427
  %vm801 = vweird.f32 %v795
  %vm802 = vmor %vm800, %vm801
  %v803 = vsel %vm802, %v795, %v799
  %v804 = vand.u32 2147483647, %v427
  %vm805 = vcmp.eq.f32.partialorder %v804, 8.507059e+37
  %v806 = vand.u32 %v427, 2147483648
  %v807 = vor.u32 1.1754944e-38, %v806
  %v808 = vsel %vm805, %v807, %v803
  %v809 = vmul.f32 1.0, %v808
  %v810 = vrcp.pop %v428
  %v811 = vmul.f32 %v428, %v810
  %v812 = vsub.f32 1.0, %v811
  %v813 = vmul.f32 %v810, %v812
  %v814 = vadd.f32 %v810, %v813
  %vm815 = vweird.f32 %v428
  %vm816 = vweird.f32 %v810
  %vm817 = vmor %vm815, %vm816
  %v818 = vsel %vm817, %v810, %v814
  %v819 = vand.u32 2147483647, %v428
  %vm820 = vcmp.eq.f32.partialorder %v819, 8.507059e+37
  %v821 = vand.u32 %v428, 2147483648
  %v822 = vor.u32 1.1754944e-38, %v821
  %v823 = vsel %vm820, %v822, %v818
  %v824 = vmul.f32 1.0, %v823
  %v825 = vrcp.pop %v429
  %v826 = vmul.f32 %v429, %v825
  %v827 = vsub.f32 1.0, %v826
  %v828 = vmul.f32 %v825, %v827
  %v829 = vadd.f32 %v825, %v828
  %vm830 = vweird.f32 %v429
  %vm831 = vweird.f32 %v825
  %vm832 = vmor %vm830, %vm831
  %v833 = vsel %vm832, %v825, %v829
  %v834 = vand.u32 2147483647, %v429
  %vm835 = vcmp.eq.f32.partialorder %v834, 8.507059e+37
  %v836 = vand.u32 %v429, 2147483648
  %v837 = vor.u32 1.1754944e-38, %v836
  %v838 = vsel %vm835, %v837, %v833
  %v839 = vmul.f32 1.0, %v838
  %v840 = vrcp.pop %v430
  %v841 = vmul.f32 %v430, %v840
  %v842 = vsub.f32 1.0, %v841
  %v843 = vmul.f32 %v840, %v842
  %v844 = vadd.f32 %v840, %v843
  %vm845 = vweird.f32 %v430
  %vm846 = vweird.f32 %v840
  %vm847 = vmor %vm845, %vm846
  %v848 = vsel %vm847, %v840, %v844
  %v849 = vand.u32 2147483647, %v430
  %vm850 = vcmp.eq.f32.partialorder %v849, 8.507059e+37
  %v851 = vand.u32 %v430, 2147483648
  %v852 = vor.u32 1.1754944e-38, %v851
  %v853 = vsel %vm850, %v852, %v848
  %v854 = vmul.f32 1.0, %v853
  %v855 = vrcp.pop %v431
  %v856 = vmul.f32 %v431, %v855
  %v857 = vsub.f32 1.0, %v856
  %v858 = vmul.f32 %v855, %v857
  %v859 = vadd.f32 %v855, %v858
  %vm860 = vweird.f32 %v431
  %vm861 = vweird.f32 %v855
  %vm862 = vmor %vm860, %vm861
  %v863 = vsel %vm862, %v855, %v859
  %v864 = vand.u32 2147483647, %v431
  %vm865 = vcmp.eq.f32.partialorder %v864, 8.507059e+37
  %v866 = vand.u32 %v431, 2147483648
  %v867 = vor.u32 1.1754944e-38, %v866
  %v868 = vsel %vm865, %v867, %v863
  %v869 = vmul.f32 1.0, %v868
  %v870 = vrcp.pop %v432
  %v871 = vmul.f32 %v432, %v870
  %v872 = vsub.f32 1.0, %v871
  %v873 = vmul.f32 %v870, %v872
  %v874 = vadd.f32 %v870, %v873
  %vm875 = vweird.f32 %v432
  %vm876 = vweird.f32 %v870
  %vm877 = vmor %vm875, %vm876
  %v878 = vsel %vm877, %v870, %v874
  %v879 = vand.u32 2147483647, %v432
  %vm880 = vcmp.eq.f32.partialorder %v879, 8.507059e+37
  %v881 = vand.u32 %v432, 2147483648
  %v882 = vor.u32 1.1754944e-38, %v881
  %v883 = vsel %vm880, %v882, %v878
  %v884 = vmul.f32 1.0, %v883
  %v885 = vrcp.pop %v433
  %v886 = vmul.f32 %v433, %v885
  %v887 = vsub.f32 1.0, %v886
  %v888 = vmul.f32 %v885, %v887
  %v889 = vadd.f32 %v885, %v888
  %vm890 = vweird.f32 %v433
  %vm891 = vweird.f32 %v885
  %vm892 = vmor %vm890, %vm891
  %v893 = vsel %vm892, %v885, %v889
  %v894 = vand.u32 2147483647, %v433
  %vm895 = vcmp.eq.f32.partialorder %v894, 8.507059e+37
  %v896 = vand.u32 %v433, 2147483648
  %v897 = vor.u32 1.1754944e-38, %v896
  %v898 = vsel %vm895, %v897, %v893
  %v899 = vmul.f32 1.0, %v898
  %v900 = vrcp.pop %v434
  %v901 = vmul.f32 %v434, %v900
  %v902 = vsub.f32 1.0, %v901
  %v903 = vmul.f32 %v900, %v902
  %v904 = vadd.f32 %v900, %v903
  %vm905 = vweird.f32 %v434
  %vm906 = vweird.f32 %v900
  %vm907 = vmor %vm905, %vm906
  %v908 = vsel %vm907, %v900, %v904
  %v909 = vand.u32 2147483647, %v434
  %vm910 = vcmp.eq.f32.partialorder %v909, 8.507059e+37
  %v911 = vand.u32 %v434, 2147483648
  %v912 = vor.u32 1.1754944e-38, %v911
  %v913 = vsel %vm910, %v912, %v908
  %v914 = vmul.f32 1.0, %v913
  %v915 = vld [vmem:[%s2 + $0x8] sm:$0xff]
  %v916 = vld [vmem:[%s2 + $0x20] sm:$0xff]
  %v917 = vld [vmem:[%s2 + $0x38] sm:$0xff]
  %v918 = vld [vmem:[%s2 + $0x50] sm:$0xff]
  %v919 = vld [vmem:[%s2 + $0x68] sm:$0xff]
  %v920 = vld [vmem:[%s2 + $0x80] sm:$0xff]
  %v921 = vld [vmem:[%s2 + $0x98] sm:$0xff]
  %v922 = vld [vmem:[%s2 + $0xb0] sm:$0xff]
  %v923 = vld [vmem:[%s2 + $0xc8] sm:$0xff]
  %v924 = vld [vmem:[%s2 + $0xe0] sm:$0xff]
  %v925 = vld [vmem:[%s2 + $0xf8] sm:$0xff]
  %v926 = vld [vmem:[%s2 + $0x110] sm:$0xff]
  %v927 = vld [vmem:[%s2 + $0x128] sm:$0xff]
  %v928 = vld [vmem:[%s2 + $0x140] sm:$0xff]
  %v929 = vld [vmem:[%s2 + $0x158] sm:$0xff]
  %v930 = vld [vmem:[%s2 + $0x170] sm:$0xff]
  %931 = vmatpush.msra.mxu0 %v930
  %932 = vmatpush.msra.mxu0 %v929
  %933 = vmatpush.msra.mxu0 %v928
  %934 = vmatpush.msra.mxu0 %v927
  %935 = vmatpush.msra.mxu0 %v926
  %936 = vmatpush.msra.mxu0 %v925
  %937 = vmatpush.msra.mxu0 %v924
  %938 = vmatpush.msra.mxu0 %v923
  %939 = vmatpush.msra.mxu0 %v922
  %940 = vmatpush.msra.mxu0 %v921
  %941 = vmatpush.msra.mxu0 %v920
  %942 = vmatpush.msra.mxu0 %v919
  %943 = vmatpush.msra.mxu0 %v918
  %944 = vmatpush.msra.mxu0 %v917
  %945 = vmatpush.msra.mxu0 %v916
  %946 = vmatpush.msra.mxu0 %v915
  %947 = vmatmul.f32.gmra.mxu0 %v82
  %v948 = vpop.f32.mrf.mxu0
  %v949 = vadd.f32 0.0, %v948
  %950 = vmatmul.f32.gmra.mxu0 %v83
  %v951 = vpop.f32.mrf.mxu0
  %v952 = vadd.f32 0.0, %v951
  %953 = vmatmul.f32.gmra.mxu0 %v84
  %v954 = vpop.f32.mrf.mxu0
  %v955 = vadd.f32 0.0, %v954
  %956 = vmatmul.f32.gmra.mxu0 %v85
  %v957 = vpop.f32.mrf.mxu0
  %v958 = vadd.f32 0.0, %v957
  %959 = vmatmul.f32.gmra.mxu0 %v86
  %v960 = vpop.f32.mrf.mxu0
  %v961 = vadd.f32 0.0, %v960
  %962 = vmatmul.f32.gmra.mxu0 %v87
  %v963 = vpop.f32.mrf.mxu0
  %v964 = vadd.f32 0.0, %v963
  %965 = vmatmul.f32.gmra.mxu0 %v88
  %v966 = vpop.f32.mrf.mxu0
  %v967 = vadd.f32 0.0, %v966
  %968 = vmatmul.f32.gmra.mxu0 %v89
  %v969 = vpop.f32.mrf.mxu0
  %v970 = vadd.f32 0.0, %v969
  %971 = vmatmul.f32.gmra.mxu0 %v90
  %v972 = vpop.f32.mrf.mxu0
  %v973 = vadd.f32 0.0, %v972
  %974 = vmatmul.f32.gmra.mxu0 %v91
  %v975 = vpop.f32.mrf.mxu0
  %v976 = vadd.f32 0.0, %v975
  %977 = vmatmul.f32.gmra.mxu0 %v92
  %v978 = vpop.f32.mrf.mxu0
  %v979 = vadd.f32 0.0, %v978
  %980 = vmatmul.f32.gmra.mxu0 %v93
  %v981 = vpop.f32.mrf.mxu0
  %v982 = vadd.f32 0.0, %v981
  %983 = vmatmul.f32.gmra.mxu0 %v94
  %v984 = vpop.f32.mrf.mxu0
  %v985 = vadd.f32 0.0, %v984
  %986 = vmatmul.f32.gmra.mxu0 %v95
  %v987 = vpop.f32.mrf.mxu0
  %v988 = vadd.f32 0.0, %v987
  %989 = vmatmul.f32.gmra.mxu0 %v96
  %v990 = vpop.f32.mrf.mxu0
  %v991 = vadd.f32 0.0, %v990
  %992 = vmatmul.f32.gmra.mxu0 %v97
  %v993 = vpop.f32.mrf.mxu0
  %v994 = vadd.f32 0.0, %v993
  %995 = vmatmul.f32.gmra.mxu0 %v98
  %v996 = vpop.f32.mrf.mxu0
  %v997 = vadd.f32 0.0, %v996
  %998 = vmatmul.f32.gmra.mxu0 %v99
  %v999 = vpop.f32.mrf.mxu0
  %v1000 = vadd.f32 0.0, %v999
  %1001 = vmatmul.f32.gmra.mxu0 %v100
  %v1002 = vpop.f32.mrf.mxu0
  %v1003 = vadd.f32 0.0, %v1002
  %1004 = vmatmul.f32.gmra.mxu0 %v101
  %v1005 = vpop.f32.mrf.mxu0
  %v1006 = vadd.f32 0.0, %v1005
  %1007 = vmatmul.f32.gmra.mxu0 %v102
  %v1008 = vpop.f32.mrf.mxu0
  %v1009 = vadd.f32 0.0, %v1008
  %1010 = vmatmul.f32.gmra.mxu0 %v103
  %v1011 = vpop.f32.mrf.mxu0
  %v1012 = vadd.f32 0.0, %v1011
  %1013 = vmatmul.f32.gmra.mxu0 %v104
  %v1014 = vpop.f32.mrf.mxu0
  %v1015 = vadd.f32 0.0, %v1014
  %1016 = vmatmul.f32.gmra.mxu0 %v105
  %v1017 = vpop.f32.mrf.mxu0
  %v1018 = vadd.f32 0.0, %v1017
  %1019 = vmatmul.f32.gmra.mxu0 %v106
  %v1020 = vpop.f32.mrf.mxu0
  %v1021 = vadd.f32 0.0, %v1020
  %1022 = vmatmul.f32.gmra.mxu0 %v107
  %v1023 = vpop.f32.mrf.mxu0
  %v1024 = vadd.f32 0.0, %v1023
  %1025 = vmatmul.f32.gmra.mxu0 %v108
  %v1026 = vpop.f32.mrf.mxu0
  %v1027 = vadd.f32 0.0, %v1026
  %1028 = vmatmul.f32.gmra.mxu0 %v109
  %v1029 = vpop.f32.mrf.mxu0
  %v1030 = vadd.f32 0.0, %v1029
  %1031 = vmatmul.f32.gmra.mxu0 %v110
  %v1032 = vpop.f32.mrf.mxu0
  %v1033 = vadd.f32 0.0, %v1032
  %1034 = vmatmul.f32.gmra.mxu0 %v111
  %v1035 = vpop.f32.mrf.mxu0
  %v1036 = vadd.f32 0.0, %v1035
  %1037 = vmatmul.f32.gmra.mxu0 %v112
  %v1038 = vpop.f32.mrf.mxu0
  %v1039 = vadd.f32 0.0, %v1038
  %1040 = vmatmul.f32.gmra.mxu0 %v113
  %v1041 = vpop.f32.mrf.mxu0
  %v1042 = vadd.f32 0.0, %v1041
  %1043 = vdwg.mxu0
  %v1044 = vld [vmem:[%s0 + $0x8] sm:$0xff]
  %v1045 = vld [vmem:[%s0 + $0x20] sm:$0xff]
  %v1046 = vld [vmem:[%s0 + $0x38] sm:$0xff]
  %v1047 = vld [vmem:[%s0 + $0x50] sm:$0xff]
  %v1048 = vld [vmem:[%s0 + $0x68] sm:$0xff]
  %v1049 = vld [vmem:[%s0 + $0x80] sm:$0xff]
  %v1050 = vld [vmem:[%s0 + $0x98] sm:$0xff]
  %v1051 = vld [vmem:[%s0 + $0xb0] sm:$0xff]
  %v1052 = vld [vmem:[%s0 + $0xc8] sm:$0xff]
  %v1053 = vld [vmem:[%s0 + $0xe0] sm:$0xff]
  %v1054 = vld [vmem:[%s0 + $0xf8] sm:$0xff]
  %v1055 = vld [vmem:[%s0 + $0x110] sm:$0xff]
  %v1056 = vld [vmem:[%s0 + $0x128] sm:$0xff]
  %v1057 = vld [vmem:[%s0 + $0x140] sm:$0xff]
  %v1058 = vld [vmem:[%s0 + $0x158] sm:$0xff]
  %v1059 = vld [vmem:[%s0 + $0x170] sm:$0xff]
  %v1060 = vld [vmem:[%s0 + $0x188] sm:$0xff]
  %v1061 = vld [vmem:[%s0 + $0x1a0] sm:$0xff]
  %v1062 = vld [vmem:[%s0 + $0x1b8] sm:$0xff]
  %v1063 = vld [vmem:[%s0 + $0x1d0] sm:$0xff]
  %v1064 = vld [vmem:[%s0 + $0x1e8] sm:$0xff]
  %v1065 = vld [vmem:[%s0 + $0x200] sm:$0xff]
  %v1066 = vld [vmem:[%s0 + $0x218] sm:$0xff]
  %v1067 = vld [vmem:[%s0 + $0x230] sm:$0xff]
  %v1068 = vld [vmem:[%s0 + $0x248] sm:$0xff]
  %v1069 = vld [vmem:[%s0 + $0x260] sm:$0xff]
  %v1070 = vld [vmem:[%s0 + $0x278] sm:$0xff]
  %v1071 = vld [vmem:[%s0 + $0x290] sm:$0xff]
  %v1072 = vld [vmem:[%s0 + $0x2a8] sm:$0xff]
  %v1073 = vld [vmem:[%s0 + $0x2c0] sm:$0xff]
  %v1074 = vld [vmem:[%s0 + $0x2d8] sm:$0xff]
  %v1075 = vld [vmem:[%s0 + $0x2f0] sm:$0xff]
  %v1076 = vadd.f32 %v1044, %v949
  %v1077 = vadd.f32 %v1045, %v952
  %v1078 = vadd.f32 %v1046, %v955
  %v1079 = vadd.f32 %v1047, %v958
  %v1080 = vadd.f32 %v1048, %v961
  %v1081 = vadd.f32 %v1049, %v964
  %v1082 = vadd.f32 %v1050, %v967
  %v1083 = vadd.f32 %v1051, %v970
  %v1084 = vadd.f32 %v1052, %v973
  %v1085 = vadd.f32 %v1053, %v976
  %v1086 = vadd.f32 %v1054, %v979
  %v1087 = vadd.f32 %v1055, %v982
  %v1088 = vadd.f32 %v1056, %v985
  %v1089 = vadd.f32 %v1057, %v988
  %v1090 = vadd.f32 %v1058, %v991
  %v1091 = vadd.f32 %v1059, %v994
  %v1092 = vadd.f32 %v1060, %v997
  %v1093 = vadd.f32 %v1061, %v1000
  %v1094 = vadd.f32 %v1062, %v1003
  %v1095 = vadd.f32 %v1063, %v1006
  %v1096 = vadd.f32 %v1064, %v1009
  %v1097 = vadd.f32 %v1065, %v1012
  %v1098 = vadd.f32 %v1066, %v1015
  %v1099 = vadd.f32 %v1067, %v1018
  %v1100 = vadd.f32 %v1068, %v1021
  %v1101 = vadd.f32 %v1069, %v1024
  %v1102 = vadd.f32 %v1070, %v1027
  %v1103 = vadd.f32 %v1071, %v1030
  %v1104 = vadd.f32 %v1072, %v1033
  %v1105 = vadd.f32 %v1073, %v1036
  %v1106 = vadd.f32 %v1074, %v1039
  %v1107 = vadd.f32 %v1075, %v1042
  %v1108 = vxor.u32 %v1076, 2147483648
  %v1109 = vxor.u32 %v1077, 2147483648
  %v1110 = vxor.u32 %v1078, 2147483648
  %v1111 = vxor.u32 %v1079, 2147483648
  %v1112 = vxor.u32 %v1080, 2147483648
  %v1113 = vxor.u32 %v1081, 2147483648
  %v1114 = vxor.u32 %v1082, 2147483648
  %v1115 = vxor.u32 %v1083, 2147483648
  %v1116 = vxor.u32 %v1084, 2147483648
  %v1117 = vxor.u32 %v1085, 2147483648
  %v1118 = vxor.u32 %v1086, 2147483648
  %v1119 = vxor.u32 %v1087, 2147483648
  %v1120 = vxor.u32 %v1088, 2147483648
  %v1121 = vxor.u32 %v1089, 2147483648
  %v1122 = vxor.u32 %v1090, 2147483648
  %v1123 = vxor.u32 %v1091, 2147483648
  %v1124 = vxor.u32 %v1092, 2147483648
  %v1125 = vxor.u32 %v1093, 2147483648
  %v1126 = vxor.u32 %v1094, 2147483648
  %v1127 = vxor.u32 %v1095, 2147483648
  %v1128 = vxor.u32 %v1096, 2147483648
  %v1129 = vxor.u32 %v1097, 2147483648
  %v1130 = vxor.u32 %v1098, 2147483648
  %v1131 = vxor.u32 %v1099, 2147483648
  %v1132 = vxor.u32 %v1100, 2147483648
  %v1133 = vxor.u32 %v1101, 2147483648
  %v1134 = vxor.u32 %v1102, 2147483648
  %v1135 = vxor.u32 %v1103, 2147483648
  %v1136 = vxor.u32 %v1104, 2147483648
  %v1137 = vxor.u32 %v1105, 2147483648
  %v1138 = vxor.u32 %v1106, 2147483648
  %v1139 = vxor.u32 %v1107, 2147483648
  %v1140 = vmul.f32 %v1108, 1.442695
  %v1141 = vpow.pop %v1140
  %v1142 = vmul.f32 %v1109, 1.442695
  %v1143 = vpow.pop %v1142
  %v1144 = vmul.f32 %v1110, 1.442695
  %v1145 = vpow.pop %v1144
  %v1146 = vmul.f32 %v1111, 1.442695
  %v1147 = vpow.pop %v1146
  %v1148 = vmul.f32 %v1112, 1.442695
  %v1149 = vpow.pop %v1148
  %v1150 = vmul.f32 %v1113, 1.442695
  %v1151 = vpow.pop %v1150
  %v1152 = vmul.f32 %v1114, 1.442695
  %v1153 = vpow.pop %v1152
  %v1154 = vmul.f32 %v1115, 1.442695
  %v1155 = vpow.pop %v1154
  %v1156 = vmul.f32 %v1116, 1.442695
  %v1157 = vpow.pop %v1156
  %v1158 = vmul.f32 %v1117, 1.442695
  %v1159 = vpow.pop %v1158
  %v1160 = vmul.f32 %v1118, 1.442695
  %v1161 = vpow.pop %v1160
  %v1162 = vmul.f32 %v1119, 1.442695
  %v1163 = vpow.pop %v1162
  %v1164 = vmul.f32 %v1120, 1.442695
  %v1165 = vpow.pop %v1164
  %v1166 = vmul.f32 %v1121, 1.442695
  %v1167 = vpow.pop %v1166
  %v1168 = vmul.f32 %v1122, 1.442695
  %v1169 = vpow.pop %v1168
  %v1170 = vmul.f32 %v1123, 1.442695
  %v1171 = vpow.pop %v1170
  %v1172 = vmul.f32 %v1124, 1.442695
  %v1173 = vpow.pop %v1172
  %v1174 = vmul.f32 %v1125, 1.442695
  %v1175 = vpow.pop %v1174
  %v1176 = vmul.f32 %v1126, 1.442695
  %v1177 = vpow.pop %v1176
  %v1178 = vmul.f32 %v1127, 1.442695
  %v1179 = vpow.pop %v1178
  %v1180 = vmul.f32 %v1128, 1.442695
  %v1181 = vpow.pop %v1180
  %v1182 = vmul.f32 %v1129, 1.442695
  %v1183 = vpow.pop %v1182
  %v1184 = vmul.f32 %v1130, 1.442695
  %v1185 = vpow.pop %v1184
  %v1186 = vmul.f32 %v1131, 1.442695
  %v1187 = vpow.pop %v1186
  %v1188 = vmul.f32 %v1132, 1.442695
  %v1189 = vpow.pop %v1188
  %v1190 = vmul.f32 %v1133, 1.442695
  %v1191 = vpow.pop %v1190
  %v1192 = vmul.f32 %v1134, 1.442695
  %v1193 = vpow.pop %v1192
  %v1194 = vmul.f32 %v1135, 1.442695
  %v1195 = vpow.pop %v1194
  %v1196 = vmul.f32 %v1136, 1.442695
  %v1197 = vpow.pop %v1196
  %v1198 = vmul.f32 %v1137, 1.442695
  %v1199 = vpow.pop %v1198
  %v1200 = vmul.f32 %v1138, 1.442695
  %v1201 = vpow.pop %v1200
  %v1202 = vmul.f32 %v1139, 1.442695
  %v1203 = vpow.pop %v1202
  %v1204 = vadd.f32 %v1141, 1.0
  %v1205 = vadd.f32 %v1143, 1.0
  %v1206 = vadd.f32 %v1145, 1.0
  %v1207 = vadd.f32 %v1147, 1.0
  %v1208 = vadd.f32 %v1149, 1.0
  %v1209 = vadd.f32 %v1151, 1.0
  %v1210 = vadd.f32 %v1153, 1.0
  %v1211 = vadd.f32 %v1155, 1.0
  %v1212 = vadd.f32 %v1157, 1.0
  %v1213 = vadd.f32 %v1159, 1.0
  %v1214 = vadd.f32 %v1161, 1.0
  %v1215 = vadd.f32 %v1163, 1.0
  %v1216 = vadd.f32 %v1165, 1.0
  %v1217 = vadd.f32 %v1167, 1.0
  %v1218 = vadd.f32 %v1169, 1.0
  %v1219 = vadd.f32 %v1171, 1.0
  %v1220 = vadd.f32 %v1173, 1.0
  %v1221 = vadd.f32 %v1175, 1.0
  %v1222 = vadd.f32 %v1177, 1.0
  %v1223 = vadd.f32 %v1179, 1.0
  %v1224 = vadd.f32 %v1181, 1.0
  %v1225 = vadd.f32 %v1183, 1.0
  %v1226 = vadd.f32 %v1185, 1.0
  %v1227 = vadd.f32 %v1187, 1.0
  %v1228 = vadd.f32 %v1189, 1.0
  %v1229 = vadd.f32 %v1191, 1.0
  %v1230 = vadd.f32 %v1193, 1.0
  %v1231 = vadd.f32 %v1195, 1.0
  %v1232 = vadd.f32 %v1197, 1.0
  %v1233 = vadd.f32 %v1199, 1.0
  %v1234 = vadd.f32 %v1201, 1.0
  %v1235 = vadd.f32 %v1203, 1.0
  %v1236 = vrcp.pop %v1204
  %v1237 = vmul.f32 %v1204, %v1236
  %v1238 = vsub.f32 1.0, %v1237
  %v1239 = vmul.f32 %v1236, %v1238
  %v1240 = vadd.f32 %v1236, %v1239
  %vm1241 = vweird.f32 %v1204
  %vm1242 = vweird.f32 %v1236
  %vm1243 = vmor %vm1241, %vm1242
  %v1244 = vsel %vm1243, %v1236, %v1240
  %v1245 = vand.u32 2147483647, %v1204
  %vm1246 = vcmp.eq.f32.partialorder %v1245, 8.507059e+37
  %v1247 = vand.u32 %v1204, 2147483648
  %v1248 = vor.u32 1.1754944e-38, %v1247
  %v1249 = vsel %vm1246, %v1248, %v1244
  %v1250 = vmul.f32 1.0, %v1249
  %v1251 = vrcp.pop %v1205
  %v1252 = vmul.f32 %v1205, %v1251
  %v1253 = vsub.f32 1.0, %v1252
  %v1254 = vmul.f32 %v1251, %v1253
  %v1255 = vadd.f32 %v1251, %v1254
  %vm1256 = vweird.f32 %v1205
  %vm1257 = vweird.f32 %v1251
  %vm1258 = vmor %vm1256, %vm1257
  %v1259 = vsel %vm1258, %v1251, %v1255
  %v1260 = vand.u32 2147483647, %v1205
  %vm1261 = vcmp.eq.f32.partialorder %v1260, 8.507059e+37
  %v1262 = vand.u32 %v1205, 2147483648
  %v1263 = vor.u32 1.1754944e-38, %v1262
  %v1264 = vsel %vm1261, %v1263, %v1259
  %v1265 = vmul.f32 1.0, %v1264
  %v1266 = vrcp.pop %v1206
  %v1267 = vmul.f32 %v1206, %v1266
  %v1268 = vsub.f32 1.0, %v1267
  %v1269 = vmul.f32 %v1266, %v1268
  %v1270 = vadd.f32 %v1266, %v1269
  %vm1271 = vweird.f32 %v1206
  %vm1272 = vweird.f32 %v1266
  %vm1273 = vmor %vm1271, %vm1272
  %v1274 = vsel %vm1273, %v1266, %v1270
  %v1275 = vand.u32 2147483647, %v1206
  %vm1276 = vcmp.eq.f32.partialorder %v1275, 8.507059e+37
  %v1277 = vand.u32 %v1206, 2147483648
  %v1278 = vor.u32 1.1754944e-38, %v1277
  %v1279 = vsel %vm1276, %v1278, %v1274
  %v1280 = vmul.f32 1.0, %v1279
  %v1281 = vrcp.pop %v1207
  %v1282 = vmul.f32 %v1207, %v1281
  %v1283 = vsub.f32 1.0, %v1282
  %v1284 = vmul.f32 %v1281, %v1283
  %v1285 = vadd.f32 %v1281, %v1284
  %vm1286 = vweird.f32 %v1207
  %vm1287 = vweird.f32 %v1281
  %vm1288 = vmor %vm1286, %vm1287
  %v1289 = vsel %vm1288, %v1281, %v1285
  %v1290 = vand.u32 2147483647, %v1207
  %vm1291 = vcmp.eq.f32.partialorder %v1290, 8.507059e+37
  %v1292 = vand.u32 %v1207, 2147483648
  %v1293 = vor.u32 1.1754944e-38, %v1292
  %v1294 = vsel %vm1291, %v1293, %v1289
  %v1295 = vmul.f32 1.0, %v1294
  %v1296 = vrcp.pop %v1208
  %v1297 = vmul.f32 %v1208, %v1296
  %v1298 = vsub.f32 1.0, %v1297
  %v1299 = vmul.f32 %v1296, %v1298
  %v1300 = vadd.f32 %v1296, %v1299
  %vm1301 = vweird.f32 %v1208
  %vm1302 = vweird.f32 %v1296
  %vm1303 = vmor %vm1301, %vm1302
  %v1304 = vsel %vm1303, %v1296, %v1300
  %v1305 = vand.u32 2147483647, %v1208
  %vm1306 = vcmp.eq.f32.partialorder %v1305, 8.507059e+37
  %v1307 = vand.u32 %v1208, 2147483648
  %v1308 = vor.u32 1.1754944e-38, %v1307
  %v1309 = vsel %vm1306, %v1308, %v1304
  %v1310 = vmul.f32 1.0, %v1309
  %v1311 = vrcp.pop %v1209
  %v1312 = vmul.f32 %v1209, %v1311
  %v1313 = vsub.f32 1.0, %v1312
  %v1314 = vmul.f32 %v1311, %v1313
  %v1315 = vadd.f32 %v1311, %v1314
  %vm1316 = vweird.f32 %v1209
  %vm1317 = vweird.f32 %v1311
  %vm1318 = vmor %vm1316, %vm1317
  %v1319 = vsel %vm1318, %v1311, %v1315
  %v1320 = vand.u32 2147483647, %v1209
  %vm1321 = vcmp.eq.f32.partialorder %v1320, 8.507059e+37
  %v1322 = vand.u32 %v1209, 2147483648
  %v1323 = vor.u32 1.1754944e-38, %v1322
  %v1324 = vsel %vm1321, %v1323, %v1319
  %v1325 = vmul.f32 1.0, %v1324
  %v1326 = vrcp.pop %v1210
  %v1327 = vmul.f32 %v1210, %v1326
  %v1328 = vsub.f32 1.0, %v1327
  %v1329 = vmul.f32 %v1326, %v1328
  %v1330 = vadd.f32 %v1326, %v1329
  %vm1331 = vweird.f32 %v1210
  %vm1332 = vweird.f32 %v1326
  %vm1333 = vmor %vm1331, %vm1332
  %v1334 = vsel %vm1333, %v1326, %v1330
  %v1335 = vand.u32 2147483647, %v1210
  %vm1336 = vcmp.eq.f32.partialorder %v1335, 8.507059e+37
  %v1337 = vand.u32 %v1210, 2147483648
  %v1338 = vor.u32 1.1754944e-38, %v1337
  %v1339 = vsel %vm1336, %v1338, %v1334
  %v1340 = vmul.f32 1.0, %v1339
  %v1341 = vrcp.pop %v1211
  %v1342 = vmul.f32 %v1211, %v1341
  %v1343 = vsub.f32 1.0, %v1342
  %v1344 = vmul.f32 %v1341, %v1343
  %v1345 = vadd.f32 %v1341, %v1344
  %vm1346 = vweird.f32 %v1211
  %vm1347 = vweird.f32 %v1341
  %vm1348 = vmor %vm1346, %vm1347
  %v1349 = vsel %vm1348, %v1341, %v1345
  %v1350 = vand.u32 2147483647, %v1211
  %vm1351 = vcmp.eq.f32.partialorder %v1350, 8.507059e+37
  %v1352 = vand.u32 %v1211, 2147483648
  %v1353 = vor.u32 1.1754944e-38, %v1352
  %v1354 = vsel %vm1351, %v1353, %v1349
  %v1355 = vmul.f32 1.0, %v1354
  %v1356 = vrcp.pop %v1212
  %v1357 = vmul.f32 %v1212, %v1356
  %v1358 = vsub.f32 1.0, %v1357
  %v1359 = vmul.f32 %v1356, %v1358
  %v1360 = vadd.f32 %v1356, %v1359
  %vm1361 = vweird.f32 %v1212
  %vm1362 = vweird.f32 %v1356
  %vm1363 = vmor %vm1361, %vm1362
  %v1364 = vsel %vm1363, %v1356, %v1360
  %v1365 = vand.u32 2147483647, %v1212
  %vm1366 = vcmp.eq.f32.partialorder %v1365, 8.507059e+37
  %v1367 = vand.u32 %v1212, 2147483648
  %v1368 = vor.u32 1.1754944e-38, %v1367
  %v1369 = vsel %vm1366, %v1368, %v1364
  %v1370 = vmul.f32 1.0, %v1369
  %v1371 = vrcp.pop %v1213
  %v1372 = vmul.f32 %v1213, %v1371
  %v1373 = vsub.f32 1.0, %v1372
  %v1374 = vmul.f32 %v1371, %v1373
  %v1375 = vadd.f32 %v1371, %v1374
  %vm1376 = vweird.f32 %v1213
  %vm1377 = vweird.f32 %v1371
  %vm1378 = vmor %vm1376, %vm1377
  %v1379 = vsel %vm1378, %v1371, %v1375
  %v1380 = vand.u32 2147483647, %v1213
  %vm1381 = vcmp.eq.f32.partialorder %v1380, 8.507059e+37
  %v1382 = vand.u32 %v1213, 2147483648
  %v1383 = vor.u32 1.1754944e-38, %v1382
  %v1384 = vsel %vm1381, %v1383, %v1379
  %v1385 = vmul.f32 1.0, %v1384
  %v1386 = vrcp.pop %v1214
  %v1387 = vmul.f32 %v1214, %v1386
  %v1388 = vsub.f32 1.0, %v1387
  %v1389 = vmul.f32 %v1386, %v1388
  %v1390 = vadd.f32 %v1386, %v1389
  %vm1391 = vweird.f32 %v1214
  %vm1392 = vweird.f32 %v1386
  %vm1393 = vmor %vm1391, %vm1392
  %v1394 = vsel %vm1393, %v1386, %v1390
  %v1395 = vand.u32 2147483647, %v1214
  %vm1396 = vcmp.eq.f32.partialorder %v1395, 8.507059e+37
  %v1397 = vand.u32 %v1214, 2147483648
  %v1398 = vor.u32 1.1754944e-38, %v1397
  %v1399 = vsel %vm1396, %v1398, %v1394
  %v1400 = vmul.f32 1.0, %v1399
  %v1401 = vrcp.pop %v1215
  %v1402 = vmul.f32 %v1215, %v1401
  %v1403 = vsub.f32 1.0, %v1402
  %v1404 = vmul.f32 %v1401, %v1403
  %v1405 = vadd.f32 %v1401, %v1404
  %vm1406 = vweird.f32 %v1215
  %vm1407 = vweird.f32 %v1401
  %vm1408 = vmor %vm1406, %vm1407
  %v1409 = vsel %vm1408, %v1401, %v1405
  %v1410 = vand.u32 2147483647, %v1215
  %vm1411 = vcmp.eq.f32.partialorder %v1410, 8.507059e+37
  %v1412 = vand.u32 %v1215, 2147483648
  %v1413 = vor.u32 1.1754944e-38, %v1412
  %v1414 = vsel %vm1411, %v1413, %v1409
  %v1415 = vmul.f32 1.0, %v1414
  %v1416 = vrcp.pop %v1216
  %v1417 = vmul.f32 %v1216, %v1416
  %v1418 = vsub.f32 1.0, %v1417
  %v1419 = vmul.f32 %v1416, %v1418
  %v1420 = vadd.f32 %v1416, %v1419
  %vm1421 = vweird.f32 %v1216
  %vm1422 = vweird.f32 %v1416
  %vm1423 = vmor %vm1421, %vm1422
  %v1424 = vsel %vm1423, %v1416, %v1420
  %v1425 = vand.u32 2147483647, %v1216
  %vm1426 = vcmp.eq.f32.partialorder %v1425, 8.507059e+37
  %v1427 = vand.u32 %v1216, 2147483648
  %v1428 = vor.u32 1.1754944e-38, %v1427
  %v1429 = vsel %vm1426, %v1428, %v1424
  %v1430 = vmul.f32 1.0, %v1429
  %v1431 = vrcp.pop %v1217
  %v1432 = vmul.f32 %v1217, %v1431
  %v1433 = vsub.f32 1.0, %v1432
  %v1434 = vmul.f32 %v1431, %v1433
  %v1435 = vadd.f32 %v1431, %v1434
  %vm1436 = vweird.f32 %v1217
  %vm1437 = vweird.f32 %v1431
  %vm1438 = vmor %vm1436, %vm1437
  %v1439 = vsel %vm1438, %v1431, %v1435
  %v1440 = vand.u32 2147483647, %v1217
  %vm1441 = vcmp.eq.f32.partialorder %v1440, 8.507059e+37
  %v1442 = vand.u32 %v1217, 2147483648
  %v1443 = vor.u32 1.1754944e-38, %v1442
  %v1444 = vsel %vm1441, %v1443, %v1439
  %v1445 = vmul.f32 1.0, %v1444
  %v1446 = vrcp.pop %v1218
  %v1447 = vmul.f32 %v1218, %v1446
  %v1448 = vsub.f32 1.0, %v1447
  %v1449 = vmul.f32 %v1446, %v1448
  %v1450 = vadd.f32 %v1446, %v1449
  %vm1451 = vweird.f32 %v1218
  %vm1452 = vweird.f32 %v1446
  %vm1453 = vmor %vm1451, %vm1452
  %v1454 = vsel %vm1453, %v1446, %v1450
  %v1455 = vand.u32 2147483647, %v1218
  %vm1456 = vcmp.eq.f32.partialorder %v1455, 8.507059e+37
  %v1457 = vand.u32 %v1218, 2147483648
  %v1458 = vor.u32 1.1754944e-38, %v1457
  %v1459 = vsel %vm1456, %v1458, %v1454
  %v1460 = vmul.f32 1.0, %v1459
  %v1461 = vrcp.pop %v1219
  %v1462 = vmul.f32 %v1219, %v1461
  %v1463 = vsub.f32 1.0, %v1462
  %v1464 = vmul.f32 %v1461, %v1463
  %v1465 = vadd.f32 %v1461, %v1464
  %vm1466 = vweird.f32 %v1219
  %vm1467 = vweird.f32 %v1461
  %vm1468 = vmor %vm1466, %vm1467
  %v1469 = vsel %vm1468, %v1461, %v1465
  %v1470 = vand.u32 2147483647, %v1219
  %vm1471 = vcmp.eq.f32.partialorder %v1470, 8.507059e+37
  %v1472 = vand.u32 %v1219, 2147483648
  %v1473 = vor.u32 1.1754944e-38, %v1472
  %v1474 = vsel %vm1471, %v1473, %v1469
  %v1475 = vmul.f32 1.0, %v1474
  %v1476 = vrcp.pop %v1220
  %v1477 = vmul.f32 %v1220, %v1476
  %v1478 = vsub.f32 1.0, %v1477
  %v1479 = vmul.f32 %v1476, %v1478
  %v1480 = vadd.f32 %v1476, %v1479
  %vm1481 = vweird.f32 %v1220
  %vm1482 = vweird.f32 %v1476
  %vm1483 = vmor %vm1481, %vm1482
  %v1484 = vsel %vm1483, %v1476, %v1480
  %v1485 = vand.u32 2147483647, %v1220
  %vm1486 = vcmp.eq.f32.partialorder %v1485, 8.507059e+37
  %v1487 = vand.u32 %v1220, 2147483648
  %v1488 = vor.u32 1.1754944e-38, %v1487
  %v1489 = vsel %vm1486, %v1488, %v1484
  %v1490 = vmul.f32 1.0, %v1489
  %v1491 = vrcp.pop %v1221
  %v1492 = vmul.f32 %v1221, %v1491
  %v1493 = vsub.f32 1.0, %v1492
  %v1494 = vmul.f32 %v1491, %v1493
  %v1495 = vadd.f32 %v1491, %v1494
  %vm1496 = vweird.f32 %v1221
  %vm1497 = vweird.f32 %v1491
  %vm1498 = vmor %vm1496, %vm1497
  %v1499 = vsel %vm1498, %v1491, %v1495
  %v1500 = vand.u32 2147483647, %v1221
  %vm1501 = vcmp.eq.f32.partialorder %v1500, 8.507059e+37
  %v1502 = vand.u32 %v1221, 2147483648
  %v1503 = vor.u32 1.1754944e-38, %v1502
  %v1504 = vsel %vm1501, %v1503, %v1499
  %v1505 = vmul.f32 1.0, %v1504
  %v1506 = vrcp.pop %v1222
  %v1507 = vmul.f32 %v1222, %v1506
  %v1508 = vsub.f32 1.0, %v1507
  %v1509 = vmul.f32 %v1506, %v1508
  %v1510 = vadd.f32 %v1506, %v1509
  %vm1511 = vweird.f32 %v1222
  %vm1512 = vweird.f32 %v1506
  %vm1513 = vmor %vm1511, %vm1512
  %v1514 = vsel %vm1513, %v1506, %v1510
  %v1515 = vand.u32 2147483647, %v1222
  %vm1516 = vcmp.eq.f32.partialorder %v1515, 8.507059e+37
  %v1517 = vand.u32 %v1222, 2147483648
  %v1518 = vor.u32 1.1754944e-38, %v1517
  %v1519 = vsel %vm1516, %v1518, %v1514
  %v1520 = vmul.f32 1.0, %v1519
  %v1521 = vrcp.pop %v1223
  %v1522 = vmul.f32 %v1223, %v1521
  %v1523 = vsub.f32 1.0, %v1522
  %v1524 = vmul.f32 %v1521, %v1523
  %v1525 = vadd.f32 %v1521, %v1524
  %vm1526 = vweird.f32 %v1223
  %vm1527 = vweird.f32 %v1521
  %vm1528 = vmor %vm1526, %vm1527
  %v1529 = vsel %vm1528, %v1521, %v1525
  %v1530 = vand.u32 2147483647, %v1223
  %vm1531 = vcmp.eq.f32.partialorder %v1530, 8.507059e+37
  %v1532 = vand.u32 %v1223, 2147483648
  %v1533 = vor.u32 1.1754944e-38, %v1532
  %v1534 = vsel %vm1531, %v1533, %v1529
  %v1535 = vmul.f32 1.0, %v1534
  %v1536 = vrcp.pop %v1224
  %v1537 = vmul.f32 %v1224, %v1536
  %v1538 = vsub.f32 1.0, %v1537
  %v1539 = vmul.f32 %v1536, %v1538
  %v1540 = vadd.f32 %v1536, %v1539
  %vm1541 = vweird.f32 %v1224
  %vm1542 = vweird.f32 %v1536
  %vm1543 = vmor %vm1541, %vm1542
  %v1544 = vsel %vm1543, %v1536, %v1540
  %v1545 = vand.u32 2147483647, %v1224
  %vm1546 = vcmp.eq.f32.partialorder %v1545, 8.507059e+37
  %v1547 = vand.u32 %v1224, 2147483648
  %v1548 = vor.u32 1.1754944e-38, %v1547
  %v1549 = vsel %vm1546, %v1548, %v1544
  %v1550 = vmul.f32 1.0, %v1549
  %v1551 = vrcp.pop %v1225
  %v1552 = vmul.f32 %v1225, %v1551
  %v1553 = vsub.f32 1.0, %v1552
  %v1554 = vmul.f32 %v1551, %v1553
  %v1555 = vadd.f32 %v1551, %v1554
  %vm1556 = vweird.f32 %v1225
  %vm1557 = vweird.f32 %v1551
  %vm1558 = vmor %vm1556, %vm1557
  %v1559 = vsel %vm1558, %v1551, %v1555
  %v1560 = vand.u32 2147483647, %v1225
  %vm1561 = vcmp.eq.f32.partialorder %v1560, 8.507059e+37
  %v1562 = vand.u32 %v1225, 2147483648
  %v1563 = vor.u32 1.1754944e-38, %v1562
  %v1564 = vsel %vm1561, %v1563, %v1559
  %v1565 = vmul.f32 1.0, %v1564
  %v1566 = vrcp.pop %v1226
  %v1567 = vmul.f32 %v1226, %v1566
  %v1568 = vsub.f32 1.0, %v1567
  %v1569 = vmul.f32 %v1566, %v1568
  %v1570 = vadd.f32 %v1566, %v1569
  %vm1571 = vweird.f32 %v1226
  %vm1572 = vweird.f32 %v1566
  %vm1573 = vmor %vm1571, %vm1572
  %v1574 = vsel %vm1573, %v1566, %v1570
  %v1575 = vand.u32 2147483647, %v1226
  %vm1576 = vcmp.eq.f32.partialorder %v1575, 8.507059e+37
  %v1577 = vand.u32 %v1226, 2147483648
  %v1578 = vor.u32 1.1754944e-38, %v1577
  %v1579 = vsel %vm1576, %v1578, %v1574
  %v1580 = vmul.f32 1.0, %v1579
  %v1581 = vrcp.pop %v1227
  %v1582 = vmul.f32 %v1227, %v1581
  %v1583 = vsub.f32 1.0, %v1582
  %v1584 = vmul.f32 %v1581, %v1583
  %v1585 = vadd.f32 %v1581, %v1584
  %vm1586 = vweird.f32 %v1227
  %vm1587 = vweird.f32 %v1581
  %vm1588 = vmor %vm1586, %vm1587
  %v1589 = vsel %vm1588, %v1581, %v1585
  %v1590 = vand.u32 2147483647, %v1227
  %vm1591 = vcmp.eq.f32.partialorder %v1590, 8.507059e+37
  %v1592 = vand.u32 %v1227, 2147483648
  %v1593 = vor.u32 1.1754944e-38, %v1592
  %v1594 = vsel %vm1591, %v1593, %v1589
  %v1595 = vmul.f32 1.0, %v1594
  %v1596 = vrcp.pop %v1228
  %v1597 = vmul.f32 %v1228, %v1596
  %v1598 = vsub.f32 1.0, %v1597
  %v1599 = vmul.f32 %v1596, %v1598
  %v1600 = vadd.f32 %v1596, %v1599
  %vm1601 = vweird.f32 %v1228
  %vm1602 = vweird.f32 %v1596
  %vm1603 = vmor %vm1601, %vm1602
  %v1604 = vsel %vm1603, %v1596, %v1600
  %v1605 = vand.u32 2147483647, %v1228
  %vm1606 = vcmp.eq.f32.partialorder %v1605, 8.507059e+37
  %v1607 = vand.u32 %v1228, 2147483648
  %v1608 = vor.u32 1.1754944e-38, %v1607
  %v1609 = vsel %vm1606, %v1608, %v1604
  %v1610 = vmul.f32 1.0, %v1609
  %v1611 = vrcp.pop %v1229
  %v1612 = vmul.f32 %v1229, %v1611
  %v1613 = vsub.f32 1.0, %v1612
  %v1614 = vmul.f32 %v1611, %v1613
  %v1615 = vadd.f32 %v1611, %v1614
  %vm1616 = vweird.f32 %v1229
  %vm1617 = vweird.f32 %v1611
  %vm1618 = vmor %vm1616, %vm1617
  %v1619 = vsel %vm1618, %v1611, %v1615
  %v1620 = vand.u32 2147483647, %v1229
  %vm1621 = vcmp.eq.f32.partialorder %v1620, 8.507059e+37
  %v1622 = vand.u32 %v1229, 2147483648
  %v1623 = vor.u32 1.1754944e-38, %v1622
  %v1624 = vsel %vm1621, %v1623, %v1619
  %v1625 = vmul.f32 1.0, %v1624
  %v1626 = vrcp.pop %v1230
  %v1627 = vmul.f32 %v1230, %v1626
  %v1628 = vsub.f32 1.0, %v1627
  %v1629 = vmul.f32 %v1626, %v1628
  %v1630 = vadd.f32 %v1626, %v1629
  %vm1631 = vweird.f32 %v1230
  %vm1632 = vweird.f32 %v1626
  %vm1633 = vmor %vm1631, %vm1632
  %v1634 = vsel %vm1633, %v1626, %v1630
  %v1635 = vand.u32 2147483647, %v1230
  %vm1636 = vcmp.eq.f32.partialorder %v1635, 8.507059e+37
  %v1637 = vand.u32 %v1230, 2147483648
  %v1638 = vor.u32 1.1754944e-38, %v1637
  %v1639 = vsel %vm1636, %v1638, %v1634
  %v1640 = vmul.f32 1.0, %v1639
  %v1641 = vrcp.pop %v1231
  %v1642 = vmul.f32 %v1231, %v1641
  %v1643 = vsub.f32 1.0, %v1642
  %v1644 = vmul.f32 %v1641, %v1643
  %v1645 = vadd.f32 %v1641, %v1644
  %vm1646 = vweird.f32 %v1231
  %vm1647 = vweird.f32 %v1641
  %vm1648 = vmor %vm1646, %vm1647
  %v1649 = vsel %vm1648, %v1641, %v1645
  %v1650 = vand.u32 2147483647, %v1231
  %vm1651 = vcmp.eq.f32.partialorder %v1650, 8.507059e+37
  %v1652 = vand.u32 %v1231, 2147483648
  %v1653 = vor.u32 1.1754944e-38, %v1652
  %v1654 = vsel %vm1651, %v1653, %v1649
  %v1655 = vmul.f32 1.0, %v1654
  %v1656 = vrcp.pop %v1232
  %v1657 = vmul.f32 %v1232, %v1656
  %v1658 = vsub.f32 1.0, %v1657
  %v1659 = vmul.f32 %v1656, %v1658
  %v1660 = vadd.f32 %v1656, %v1659
  %vm1661 = vweird.f32 %v1232
  %vm1662 = vweird.f32 %v1656
  %vm1663 = vmor %vm1661, %vm1662
  %v1664 = vsel %vm1663, %v1656, %v1660
  %v1665 = vand.u32 2147483647, %v1232
  %vm1666 = vcmp.eq.f32.partialorder %v1665, 8.507059e+37
  %v1667 = vand.u32 %v1232, 2147483648
  %v1668 = vor.u32 1.1754944e-38, %v1667
  %v1669 = vsel %vm1666, %v1668, %v1664
  %v1670 = vmul.f32 1.0, %v1669
  %v1671 = vrcp.pop %v1233
  %v1672 = vmul.f32 %v1233, %v1671
  %v1673 = vsub.f32 1.0, %v1672
  %v1674 = vmul.f32 %v1671, %v1673
  %v1675 = vadd.f32 %v1671, %v1674
  %vm1676 = vweird.f32 %v1233
  %vm1677 = vweird.f32 %v1671
  %vm1678 = vmor %vm1676, %vm1677
  %v1679 = vsel %vm1678, %v1671, %v1675
  %v1680 = vand.u32 2147483647, %v1233
  %vm1681 = vcmp.eq.f32.partialorder %v1680, 8.507059e+37
  %v1682 = vand.u32 %v1233, 2147483648
  %v1683 = vor.u32 1.1754944e-38, %v1682
  %v1684 = vsel %vm1681, %v1683, %v1679
  %v1685 = vmul.f32 1.0, %v1684
  %v1686 = vrcp.pop %v1234
  %v1687 = vmul.f32 %v1234, %v1686
  %v1688 = vsub.f32 1.0, %v1687
  %v1689 = vmul.f32 %v1686, %v1688
  %v1690 = vadd.f32 %v1686, %v1689
  %vm1691 = vweird.f32 %v1234
  %vm1692 = vweird.f32 %v1686
  %vm1693 = vmor %vm1691, %vm1692
  %v1694 = vsel %vm1693, %v1686, %v1690
  %v1695 = vand.u32 2147483647, %v1234
  %vm1696 = vcmp.eq.f32.partialorder %v1695, 8.507059e+37
  %v1697 = vand.u32 %v1234, 2147483648
  %v1698 = vor.u32 1.1754944e-38, %v1697
  %v1699 = vsel %vm1696, %v1698, %v1694
  %v1700 = vmul.f32 1.0, %v1699
  %v1701 = vrcp.pop %v1235
  %v1702 = vmul.f32 %v1235, %v1701
  %v1703 = vsub.f32 1.0, %v1702
  %v1704 = vmul.f32 %v1701, %v1703
  %v1705 = vadd.f32 %v1701, %v1704
  %vm1706 = vweird.f32 %v1235
  %vm1707 = vweird.f32 %v1701
  %vm1708 = vmor %vm1706, %vm1707
  %v1709 = vsel %vm1708, %v1701, %v1705
  %v1710 = vand.u32 2147483647, %v1235
  %vm1711 = vcmp.eq.f32.partialorder %v1710, 8.507059e+37
  %v1712 = vand.u32 %v1235, 2147483648
  %v1713 = vor.u32 1.1754944e-38, %v1712
  %v1714 = vsel %vm1711, %v1713, %v1709
  %v1715 = vmul.f32 1.0, %v1714
  %v1716 = vld [vmem:[%s2 + $0x10] sm:$0xff]
  %v1717 = vld [vmem:[%s2 + $0x28] sm:$0xff]
  %v1718 = vld [vmem:[%s2 + $0x40] sm:$0xff]
  %v1719 = vld [vmem:[%s2 + $0x58] sm:$0xff]
  %v1720 = vld [vmem:[%s2 + $0x70] sm:$0xff]
  %v1721 = vld [vmem:[%s2 + $0x88] sm:$0xff]
  %v1722 = vld [vmem:[%s2 + $0xa0] sm:$0xff]
  %v1723 = vld [vmem:[%s2 + $0xb8] sm:$0xff]
  %v1724 = vld [vmem:[%s2 + $0xd0] sm:$0xff]
  %v1725 = vld [vmem:[%s2 + $0xe8] sm:$0xff]
  %v1726 = vld [vmem:[%s2 + $0x100] sm:$0xff]
  %v1727 = vld [vmem:[%s2 + $0x118] sm:$0xff]
  %v1728 = vld [vmem:[%s2 + $0x130] sm:$0xff]
  %v1729 = vld [vmem:[%s2 + $0x148] sm:$0xff]
  %v1730 = vld [vmem:[%s2 + $0x160] sm:$0xff]
  %v1731 = vld [vmem:[%s2 + $0x178] sm:$0xff]
  %1732 = vmatpush.msra.mxu0 %v1731
  %1733 = vmatpush.msra.mxu0 %v1730
  %1734 = vmatpush.msra.mxu0 %v1729
  %1735 = vmatpush.msra.mxu0 %v1728
  %1736 = vmatpush.msra.mxu0 %v1727
  %1737 = vmatpush.msra.mxu0 %v1726
  %1738 = vmatpush.msra.mxu0 %v1725
  %1739 = vmatpush.msra.mxu0 %v1724
  %1740 = vmatpush.msra.mxu0 %v1723
  %1741 = vmatpush.msra.mxu0 %v1722
  %1742 = vmatpush.msra.mxu0 %v1721
  %1743 = vmatpush.msra.mxu0 %v1720
  %1744 = vmatpush.msra.mxu0 %v1719
  %1745 = vmatpush.msra.mxu0 %v1718
  %1746 = vmatpush.msra.mxu0 %v1717
  %1747 = vmatpush.msra.mxu0 %v1716
  %1748 = vmatmul.f32.gmra.mxu0 %v82
  %v1749 = vpop.f32.mrf.mxu0
  %v1750 = vadd.f32 0.0, %v1749
  %1751 = vmatmul.f32.gmra.mxu0 %v83
  %v1752 = vpop.f32.mrf.mxu0
  %v1753 = vadd.f32 0.0, %v1752
  %1754 = vmatmul.f32.gmra.mxu0 %v84
  %v1755 = vpop.f32.mrf.mxu0
  %v1756 = vadd.f32 0.0, %v1755
  %1757 = vmatmul.f32.gmra.mxu0 %v85
  %v1758 = vpop.f32.mrf.mxu0
  %v1759 = vadd.f32 0.0, %v1758
  %1760 = vmatmul.f32.gmra.mxu0 %v86
  %v1761 = vpop.f32.mrf.mxu0
  %v1762 = vadd.f32 0.0, %v1761
  %1763 = vmatmul.f32.gmra.mxu0 %v87
  %v1764 = vpop.f32.mrf.mxu0
  %v1765 = vadd.f32 0.0, %v1764
  %1766 = vmatmul.f32.gmra.mxu0 %v88
  %v1767 = vpop.f32.mrf.mxu0
  %v1768 = vadd.f32 0.0, %v1767
  %1769 = vmatmul.f32.gmra.mxu0 %v89
  %v1770 = vpop.f32.mrf.mxu0
  %v1771 = vadd.f32 0.0, %v1770
  %1772 = vmatmul.f32.gmra.mxu0 %v90
  %v1773 = vpop.f32.mrf.mxu0
  %v1774 = vadd.f32 0.0, %v1773
  %1775 = vmatmul.f32.gmra.mxu0 %v91
  %v1776 = vpop.f32.mrf.mxu0
  %v1777 = vadd.f32 0.0, %v1776
  %1778 = vmatmul.f32.gmra.mxu0 %v92
  %v1779 = vpop.f32.mrf.mxu0
  %v1780 = vadd.f32 0.0, %v1779
  %1781 = vmatmul.f32.gmra.mxu0 %v93
  %v1782 = vpop.f32.mrf.mxu0
  %v1783 = vadd.f32 0.0, %v1782
  %1784 = vmatmul.f32.gmra.mxu0 %v94
  %v1785 = vpop.f32.mrf.mxu0
  %v1786 = vadd.f32 0.0, %v1785
  %1787 = vmatmul.f32.gmra.mxu0 %v95
  %v1788 = vpop.f32.mrf.mxu0
  %v1789 = vadd.f32 0.0, %v1788
  %1790 = vmatmul.f32.gmra.mxu0 %v96
  %v1791 = vpop.f32.mrf.mxu0
  %v1792 = vadd.f32 0.0, %v1791
  %1793 = vmatmul.f32.gmra.mxu0 %v97
  %v1794 = vpop.f32.mrf.mxu0
  %v1795 = vadd.f32 0.0, %v1794
  %1796 = vmatmul.f32.gmra.mxu0 %v98
  %v1797 = vpop.f32.mrf.mxu0
  %v1798 = vadd.f32 0.0, %v1797
  %1799 = vmatmul.f32.gmra.mxu0 %v99
  %v1800 = vpop.f32.mrf.mxu0
  %v1801 = vadd.f32 0.0, %v1800
  %1802 = vmatmul.f32.gmra.mxu0 %v100
  %v1803 = vpop.f32.mrf.mxu0
  %v1804 = vadd.f32 0.0, %v1803
  %1805 = vmatmul.f32.gmra.mxu0 %v101
  %v1806 = vpop.f32.mrf.mxu0
  %v1807 = vadd.f32 0.0, %v1806
  %1808 = vmatmul.f32.gmra.mxu0 %v102
  %v1809 = vpop.f32.mrf.mxu0
  %v1810 = vadd.f32 0.0, %v1809
  %1811 = vmatmul.f32.gmra.mxu0 %v103
  %v1812 = vpop.f32.mrf.mxu0
  %v1813 = vadd.f32 0.0, %v1812
  %1814 = vmatmul.f32.gmra.mxu0 %v104
  %v1815 = vpop.f32.mrf.mxu0
  %v1816 = vadd.f32 0.0, %v1815
  %1817 = vmatmul.f32.gmra.mxu0 %v105
  %v1818 = vpop.f32.mrf.mxu0
  %v1819 = vadd.f32 0.0, %v1818
  %1820 = vmatmul.f32.gmra.mxu0 %v106
  %v1821 = vpop.f32.mrf.mxu0
  %v1822 = vadd.f32 0.0, %v1821
  %1823 = vmatmul.f32.gmra.mxu0 %v107
  %v1824 = vpop.f32.mrf.mxu0
  %v1825 = vadd.f32 0.0, %v1824
  %1826 = vmatmul.f32.gmra.mxu0 %v108
  %v1827 = vpop.f32.mrf.mxu0
  %v1828 = vadd.f32 0.0, %v1827
  %1829 = vmatmul.f32.gmra.mxu0 %v109
  %v1830 = vpop.f32.mrf.mxu0
  %v1831 = vadd.f32 0.0, %v1830
  %1832 = vmatmul.f32.gmra.mxu0 %v110
  %v1833 = vpop.f32.mrf.mxu0
  %v1834 = vadd.f32 0.0, %v1833
  %1835 = vmatmul.f32.gmra.mxu0 %v111
  %v1836 = vpop.f32.mrf.mxu0
  %v1837 = vadd.f32 0.0, %v1836
  %1838 = vmatmul.f32.gmra.mxu0 %v112
  %v1839 = vpop.f32.mrf.mxu0
  %v1840 = vadd.f32 0.0, %v1839
  %1841 = vmatmul.f32.gmra.mxu0 %v113
  %v1842 = vpop.f32.mrf.mxu0
  %v1843 = vadd.f32 0.0, %v1842
  %1844 = vdwg.mxu0
  %v1845 = vld [vmem:[%s0 + $0x10] sm:$0xff]
  %v1846 = vld [vmem:[%s0 + $0x28] sm:$0xff]
  %v1847 = vld [vmem:[%s0 + $0x40] sm:$0xff]
  %v1848 = vld [vmem:[%s0 + $0x58] sm:$0xff]
  %v1849 = vld [vmem:[%s0 + $0x70] sm:$0xff]
  %v1850 = vld [vmem:[%s0 + $0x88] sm:$0xff]
  %v1851 = vld [vmem:[%s0 + $0xa0] sm:$0xff]
  %v1852 = vld [vmem:[%s0 + $0xb8] sm:$0xff]
  %v1853 = vld [vmem:[%s0 + $0xd0] sm:$0xff]
  %v1854 = vld [vmem:[%s0 + $0xe8] sm:$0xff]
  %v1855 = vld [vmem:[%s0 + $0x100] sm:$0xff]
  %v1856 = vld [vmem:[%s0 + $0x118] sm:$0xff]
  %v1857 = vld [vmem:[%s0 + $0x130] sm:$0xff]
  %v1858 = vld [vmem:[%s0 + $0x148] sm:$0xff]
  %v1859 = vld [vmem:[%s0 + $0x160] sm:$0xff]
  %v1860 = vld [vmem:[%s0 + $0x178] sm:$0xff]
  %v1861 = vld [vmem:[%s0 + $0x190] sm:$0xff]
  %v1862 = vld [vmem:[%s0 + $0x1a8] sm:$0xff]
  %v1863 = vld [vmem:[%s0 + $0x1c0] sm:$0xff]
  %v1864 = vld [vmem:[%s0 + $0x1d8] sm:$0xff]
  %v1865 = vld [vmem:[%s0 + $0x1f0] sm:$0xff]
  %v1866 = vld [vmem:[%s0 + $0x208] sm:$0xff]
  %v1867 = vld [vmem:[%s0 + $0x220] sm:$0xff]
  %v1868 = vld [vmem:[%s0 + $0x238] sm:$0xff]
  %v1869 = vld [vmem:[%s0 + $0x250] sm:$0xff]
  %v1870 = vld [vmem:[%s0 + $0x268] sm:$0xff]
  %v1871 = vld [vmem:[%s0 + $0x280] sm:$0xff]
  %v1872 = vld [vmem:[%s0 + $0x298] sm:$0xff]
  %v1873 = vld [vmem:[%s0 + $0x2b0] sm:$0xff]
  %v1874 = vld [vmem:[%s0 + $0x2c8] sm:$0xff]
  %v1875 = vld [vmem:[%s0 + $0x2e0] sm:$0xff]
  %v1876 = vld [vmem:[%s0 + $0x2f8] sm:$0xff]
  %v1877 = vmul.f32 %v1250, %v1750
  %v1878 = vmul.f32 %v1265, %v1753
  %v1879 = vmul.f32 %v1280, %v1756
  %v1880 = vmul.f32 %v1295, %v1759
  %v1881 = vmul.f32 %v1310, %v1762
  %v1882 = vmul.f32 %v1325, %v1765
  %v1883 = vmul.f32 %v1340, %v1768
  %v1884 = vmul.f32 %v1355, %v1771
  %v1885 = vmul.f32 %v1370, %v1774
  %v1886 = vmul.f32 %v1385, %v1777
  %v1887 = vmul.f32 %v1400, %v1780
  %v1888 = vmul.f32 %v1415, %v1783
  %v1889 = vmul.f32 %v1430, %v1786
  %v1890 = vmul.f32 %v1445, %v1789
  %v1891 = vmul.f32 %v1460, %v1792
  %v1892 = vmul.f32 %v1475, %v1795
  %v1893 = vmul.f32 %v1490, %v1798
  %v1894 = vmul.f32 %v1505, %v1801
  %v1895 = vmul.f32 %v1520, %v1804
  %v1896 = vmul.f32 %v1535, %v1807
  %v1897 = vmul.f32 %v1550, %v1810
  %v1898 = vmul.f32 %v1565, %v1813
  %v1899 = vmul.f32 %v1580, %v1816
  %v1900 = vmul.f32 %v1595, %v1819
  %v1901 = vmul.f32 %v1610, %v1822
  %v1902 = vmul.f32 %v1625, %v1825
  %v1903 = vmul.f32 %v1640, %v1828
  %v1904 = vmul.f32 %v1655, %v1831
  %v1905 = vmul.f32 %v1670, %v1834
  %v1906 = vmul.f32 %v1685, %v1837
  %v1907 = vmul.f32 %v1700, %v1840
  %v1908 = vmul.f32 %v1715, %v1843
  %v1909 = vadd.f32 %v1845, %v1877
  %v1910 = vadd.f32 %v1846, %v1878
  %v1911 = vadd.f32 %v1847, %v1879
  %v1912 = vadd.f32 %v1848, %v1880
  %v1913 = vadd.f32 %v1849, %v1881
  %v1914 = vadd.f32 %v1850, %v1882
  %v1915 = vadd.f32 %v1851, %v1883
  %v1916 = vadd.f32 %v1852, %v1884
  %v1917 = vadd.f32 %v1853, %v1885
  %v1918 = vadd.f32 %v1854, %v1886
  %v1919 = vadd.f32 %v1855, %v1887
  %v1920 = vadd.f32 %v1856, %v1888
  %v1921 = vadd.f32 %v1857, %v1889
  %v1922 = vadd.f32 %v1858, %v1890
  %v1923 = vadd.f32 %v1859, %v1891
  %v1924 = vadd.f32 %v1860, %v1892
  %v1925 = vadd.f32 %v1861, %v1893
  %v1926 = vadd.f32 %v1862, %v1894
  %v1927 = vadd.f32 %v1863, %v1895
  %v1928 = vadd.f32 %v1864, %v1896
  %v1929 = vadd.f32 %v1865, %v1897
  %v1930 = vadd.f32 %v1866, %v1898
  %v1931 = vadd.f32 %v1867, %v1899
  %v1932 = vadd.f32 %v1868, %v1900
  %v1933 = vadd.f32 %v1869, %v1901
  %v1934 = vadd.f32 %v1870, %v1902
  %v1935 = vadd.f32 %v1871, %v1903
  %v1936 = vadd.f32 %v1872, %v1904
  %v1937 = vadd.f32 %v1873, %v1905
  %v1938 = vadd.f32 %v1874, %v1906
  %v1939 = vadd.f32 %v1875, %v1907
  %v1940 = vadd.f32 %v1876, %v1908
  %v1941 = vtanh.pop %v1909
  %v1942 = vtanh.pop %v1910
  %v1943 = vtanh.pop %v1911
  %v1944 = vtanh.pop %v1912
  %v1945 = vtanh.pop %v1913
  %v1946 = vtanh.pop %v1914
  %v1947 = vtanh.pop %v1915
  %v1948 = vtanh.pop %v1916
  %v1949 = vtanh.pop %v1917
  %v1950 = vtanh.pop %v1918
  %v1951 = vtanh.pop %v1919
  %v1952 = vtanh.pop %v1920
  %v1953 = vtanh.pop %v1921
  %v1954 = vtanh.pop %v1922
  %v1955 = vtanh.pop %v1923
  %v1956 = vtanh.pop %v1924
  %v1957 = vtanh.pop %v1925
  %v1958 = vtanh.pop %v1926
  %v1959 = vtanh.pop %v1927
  %v1960 = vtanh.pop %v1928
  %v1961 = vtanh.pop %v1929
  %v1962 = vtanh.pop %v1930
  %v1963 = vtanh.pop %v1931
  %v1964 = vtanh.pop %v1932
  %v1965 = vtanh.pop %v1933
  %v1966 = vtanh.pop %v1934
  %v1967 = vtanh.pop %v1935
  %v1968 = vtanh.pop %v1936
  %v1969 = vtanh.pop %v1937
  %v1970 = vtanh.pop %v1938
  %v1971 = vtanh.pop %v1939
  %v1972 = vtanh.pop %v1940
  %v1973 = vsub.f32 1.0, %v449
  %v1974 = vsub.f32 1.0, %v464
  %v1975 = vsub.f32 1.0, %v479
  %v1976 = vsub.f32 1.0, %v494
  %v1977 = vsub.f32 1.0, %v509
  %v1978 = vsub.f32 1.0, %v524
  %v1979 = vsub.f32 1.0, %v539
  %v1980 = vsub.f32 1.0, %v554
  %v1981 = vsub.f32 1.0, %v569
  %v1982 = vsub.f32 1.0, %v584
  %v1983 = vsub.f32 1.0, %v599
  %v1984 = vsub.f32 1.0, %v614
  %v1985 = vsub.f32 1.0, %v629
  %v1986 = vsub.f32 1.0, %v644
  %v1987 = vsub.f32 1.0, %v659
  %v1988 = vsub.f32 1.0, %v674
  %v1989 = vsub.f32 1.0, %v689
  %v1990 = vsub.f32 1.0, %v704
  %v1991 = vsub.f32 1.0, %v719
  %v1992 = vsub.f32 1.0, %v734
  %v1993 = vsub.f32 1.0, %v749
  %v1994 = vsub.f32 1.0, %v764
  %v1995 = vsub.f32 1.0, %v779
  %v1996 = vsub.f32 1.0, %v794
  %v1997 = vsub.f32 1.0, %v809
  %v1998 = vsub.f32 1.0, %v824
  %v1999 = vsub.f32 1.0, %v839
  %v2000 = vsub.f32 1.0, %v854
  %v2001 = vsub.f32 1.0, %v869
  %v2002 = vsub.f32 1.0, %v884
  %v2003 = vsub.f32 1.0, %v899
  %v2004 = vsub.f32 1.0, %v914
  %v2005 = vmul.f32 %v1973, %v1941
  %v2006 = vmul.f32 %v1974, %v1942
  %v2007 = vmul.f32 %v1975, %v1943
  %v2008 = vmul.f32 %v1976, %v1944
  %v2009 = vmul.f32 %v1977, %v1945
  %v2010 = vmul.f32 %v1978, %v1946
  %v2011 = vmul.f32 %v1979, %v1947
  %v2012 = vmul.f32 %v1980, %v1948
  %v2013 = vmul.f32 %v1981, %v1949
  %v2014 = vmul.f32 %v1982, %v1950
  %v2015 = vmul.f32 %v1983, %v1951
  %v2016 = vmul.f32 %v1984, %v1952
  %v2017 = vmul.f32 %v1985, %v1953
  %v2018 = vmul.f32 %v1986, %v1954
  %v2019 = vmul.f32 %v1987, %v1955
  %v2020 = vmul.f32 %v1988, %v1956
  %v2021 = vmul.f32 %v1989, %v1957
  %v2022 = vmul.f32 %v1990, %v1958
  %v2023 = vmul.f32 %v1991, %v1959
  %v2024 = vmul.f32 %v1992, %v1960
  %v2025 = vmul.f32 %v1993, %v1961
  %v2026 = vmul.f32 %v1994, %v1962
  %v2027 = vmul.f32 %v1995, %v1963
  %v2028 = vmul.f32 %v1996, %v1964
  %v2029 = vmul.f32 %v1997, %v1965
  %v2030 = vmul.f32 %v1998, %v1966
  %v2031 = vmul.f32 %v1999, %v1967
  %v2032 = vmul.f32 %v2000, %v1968
  %v2033 = vmul.f32 %v2001, %v1969
  %v2034 = vmul.f32 %v2002, %v1970
  %v2035 = vmul.f32 %v2003, %v1971
  %v2036 = vmul.f32 %v2004, %v1972
  %v2037 = vmul.f32 %v449, %v82
  %v2038 = vmul.f32 %v464, %v83
  %v2039 = vmul.f32 %v479, %v84
  %v2040 = vmul.f32 %v494, %v85
  %v2041 = vmul.f32 %v509, %v86
  %v2042 = vmul.f32 %v524, %v87
  %v2043 = vmul.f32 %v539, %v88
  %v2044 = vmul.f32 %v554, %v89
  %v2045 = vmul.f32 %v569, %v90
  %v2046 = vmul.f32 %v584, %v91
  %v2047 = vmul.f32 %v599, %v92
  %v2048 = vmul.f32 %v614, %v93
  %v2049 = vmul.f32 %v629, %v94
  %v2050 = vmul.f32 %v644, %v95
  %v2051 = vmul.f32 %v659, %v96
  %v2052 = vmul.f32 %v674, %v97
  %v2053 = vmul.f32 %v689, %v98
  %v2054 = vmul.f32 %v704, %v99
  %v2055 = vmul.f32 %v719, %v100
  %v2056 = vmul.f32 %v734, %v101
  %v2057 = vmul.f32 %v749, %v102
  %v2058 = vmul.f32 %v764, %v103
  %v2059 = vmul.f32 %v779, %v104
  %v2060 = vmul.f32 %v794, %v105
  %v2061 = vmul.f32 %v809, %v106
  %v2062 = vmul.f32 %v824, %v107
  %v2063 = vmul.f32 %v839, %v108
  %v2064 = vmul.f32 %v854, %v109
  %v2065 = vmul.f32 %v869, %v110
  %v2066 = vmul.f32 %v884, %v111
  %v2067 = vmul.f32 %v899, %v112
  %v2068 = vmul.f32 %v914, %v113
  %v2069 = vadd.f32 %v2005, %v2037
  %v2070 = vadd.f32 %v2006, %v2038
  %v2071 = vadd.f32 %v2007, %v2039
  %v2072 = vadd.f32 %v2008, %v2040
  %v2073 = vadd.f32 %v2009, %v2041
  %v2074 = vadd.f32 %v2010, %v2042
  %v2075 = vadd.f32 %v2011, %v2043
  %v2076 = vadd.f32 %v2012, %v2044
  %v2077 = vadd.f32 %v2013, %v2045
  %v2078 = vadd.f32 %v2014, %v2046
  %v2079 = vadd.f32 %v2015, %v2047
  %v2080 = vadd.f32 %v2016, %v2048
  %v2081 = vadd.f32 %v2017, %v2049
  %v2082 = vadd.f32 %v2018, %v2050
  %v2083 = vadd.f32 %v2019, %v2051
  %v2084 = vadd.f32 %v2020, %v2052
  %v2085 = vadd.f32 %v2021, %v2053
  %v2086 = vadd.f32 %v2022, %v2054
  %v2087 = vadd.f32 %v2023, %v2055
  %v2088 = vadd.f32 %v2024, %v2056
  %v2089 = vadd.f32 %v2025, %v2057
  %v2090 = vadd.f32 %v2026, %v2058
  %v2091 = vadd.f32 %v2027, %v2059
  %v2092 = vadd.f32 %v2028, %v2060
  %v2093 = vadd.f32 %v2029, %v2061
  %v2094 = vadd.f32 %v2030, %v2062
  %v2095 = vadd.f32 %v2031, %v2063
  %v2096 = vadd.f32 %v2032, %v2064
  %v2097 = vadd.f32 %v2033, %v2065
  %v2098 = vadd.f32 %v2034, %v2066
  %v2099 = vadd.f32 %v2035, %v2067
  %v2100 = vadd.f32 %v2036, %v2068
  %2133 = vrot.lane.b32.xlu0 %v449, 32
  %v2134 = vpop.permute.xlu0 %2133
  %2135 = vrot.lane.b32.xlu0 %v464, 32
  %v2136 = vpop.permute.xlu0 %2135
  %2137 = vrot.lane.b32.xlu0 %v479, 32
  %v2138 = vpop.permute.xlu0 %2137
  %2139 = vrot.lane.b32.xlu0 %v494, 32
  %v2140 = vpop.permute.xlu0 %2139
  %2141 = vrot.lane.b32.xlu0 %v509, 32
  %v2142 = vpop.permute.xlu0 %2141
  %2143 = vrot.lane.b32.xlu0 %v524, 32
  %v2144 = vpop.permute.xlu0 %2143
  %2145 = vrot.lane.b32.xlu0 %v539, 32
  %v2146 = vpop.permute.xlu0 %2145
  %2147 = vrot.lane.b32.xlu0 %v554, 32
  %v2148 = vpop.permute.xlu0 %2147
  %2149 = vrot.lane.b32.xlu0 %v569, 32
  %v2150 = vpop.permute.xlu0 %2149
  %2151 = vrot.lane.b32.xlu0 %v584, 32
  %v2152 = vpop.permute.xlu0 %2151
  %2153 = vrot.lane.b32.xlu0 %v599, 32
  %v2154 = vpop.permute.xlu0 %2153
  %2155 = vrot.lane.b32.xlu0 %v614, 32
  %v2156 = vpop.permute.xlu0 %2155
  %2157 = vrot.lane.b32.xlu0 %v629, 32
  %v2158 = vpop.permute.xlu0 %2157
  %2159 = vrot.lane.b32.xlu0 %v644, 32
  %v2160 = vpop.permute.xlu0 %2159
  %2161 = vrot.lane.b32.xlu0 %v659, 32
  %v2162 = vpop.permute.xlu0 %2161
  %2163 = vrot.lane.b32.xlu0 %v674, 32
  %v2164 = vpop.permute.xlu0 %2163
  %2165 = vrot.lane.b32.xlu0 %v689, 32
  %v2166 = vpop.permute.xlu0 %2165
  %2167 = vrot.lane.b32.xlu0 %v704, 32
  %v2168 = vpop.permute.xlu0 %2167
  %2169 = vrot.lane.b32.xlu0 %v719, 32
  %v2170 = vpop.permute.xlu0 %2169
  %2171 = vrot.lane.b32.xlu0 %v734, 32
  %v2172 = vpop.permute.xlu0 %2171
  %2173 = vrot.lane.b32.xlu0 %v749, 32
  %v2174 = vpop.permute.xlu0 %2173
  %2175 = vrot.lane.b32.xlu0 %v764, 32
  %v2176 = vpop.permute.xlu0 %2175
  %2177 = vrot.lane.b32.xlu0 %v779, 32
  %v2178 = vpop.permute.xlu0 %2177
  %2179 = vrot.lane.b32.xlu0 %v794, 32
  %v2180 = vpop.permute.xlu0 %2179
  %2181 = vrot.lane.b32.xlu0 %v809, 32
  %v2182 = vpop.permute.xlu0 %2181
  %2183 = vrot.lane.b32.xlu0 %v824, 32
  %v2184 = vpop.permute.xlu0 %2183
  %2185 = vrot.lane.b32.xlu0 %v839, 32
  %v2186 = vpop.permute.xlu0 %2185
  %2187 = vrot.lane.b32.xlu0 %v854, 32
  %v2188 = vpop.permute.xlu0 %2187
  %2189 = vrot.lane.b32.xlu0 %v869, 32
  %v2190 = vpop.permute.xlu0 %2189
  %2191 = vrot.lane.b32.xlu0 %v884, 32
  %v2192 = vpop.permute.xlu0 %2191
  %2193 = vrot.lane.b32.xlu0 %v899, 32
  %v2194 = vpop.permute.xlu0 %2193
  %2195 = vrot.lane.b32.xlu0 %v914, 32
  %v2196 = vpop.permute.xlu0 %2195
  %vm2229 = vcmask 261120
  %v2230 = vsel %vm2229, %v2069, %v2134
  %v2231 = vsel %vm2229, %v2070, %v2136
  %v2232 = vsel %vm2229, %v2071, %v2138
  %v2233 = vsel %vm2229, %v2072, %v2140
  %v2234 = vsel %vm2229, %v2073, %v2142
  %v2235 = vsel %vm2229, %v2074, %v2144
  %v2236 = vsel %vm2229, %v2075, %v2146
  %v2237 = vsel %vm2229, %v2076, %v2148
  %v2238 = vsel %vm2229, %v2077, %v2150
  %v2239 = vsel %vm2229, %v2078, %v2152
  %v2240 = vsel %vm2229, %v2079, %v2154
  %v2241 = vsel %vm2229, %v2080, %v2156
  %v2242 = vsel %vm2229, %v2081, %v2158
  %v2243 = vsel %vm2229, %v2082, %v2160
  %v2244 = vsel %vm2229, %v2083, %v2162
  %v2245 = vsel %vm2229, %v2084, %v2164
  %v2246 = vsel %vm2229, %v2085, %v2166
  %v2247 = vsel %vm2229, %v2086, %v2168
  %v2248 = vsel %vm2229, %v2087, %v2170
  %v2249 = vsel %vm2229, %v2088, %v2172
  %v2250 = vsel %vm2229, %v2089, %v2174
  %v2251 = vsel %vm2229, %v2090, %v2176
  %v2252 = vsel %vm2229, %v2091, %v2178
  %v2253 = vsel %vm2229, %v2092, %v2180
  %v2254 = vsel %vm2229, %v2093, %v2182
  %v2255 = vsel %vm2229, %v2094, %v2184
  %v2256 = vsel %vm2229, %v2095, %v2186
  %v2257 = vsel %vm2229, %v2096, %v2188
  %v2258 = vsel %vm2229, %v2097, %v2190
  %v2259 = vsel %vm2229, %v2098, %v2192
  %v2260 = vsel %vm2229, %v2099, %v2194
  %v2261 = vsel %vm2229, %v2100, %v2196
  %vm2262 = vcmask 523264
  %v2263 = vsel %vm2262, %v2230, 0.0
  %v2264 = vsel %vm2262, %v2231, 0.0
  %v2265 = vsel %vm2262, %v2232, 0.0
  %v2266 = vsel %vm2262, %v2233, 0.0
  %v2267 = vsel %vm2262, %v2234, 0.0
  %v2268 = vsel %vm2262, %v2235, 0.0
  %v2269 = vsel %vm2262, %v2236, 0.0
  %v2270 = vsel %vm2262, %v2237, 0.0
  %v2271 = vsel %vm2262, %v2238, 0.0
  %v2272 = vsel %vm2262, %v2239, 0.0
  %v2273 = vsel %vm2262, %v2240, 0.0
  %v2274 = vsel %vm2262, %v2241, 0.0
  %v2275 = vsel %vm2262, %v2242, 0.0
  %v2276 = vsel %vm2262, %v2243, 0.0
  %v2277 = vsel %vm2262, %v2244, 0.0
  %v2278 = vsel %vm2262, %v2245, 0.0
  %v2279 = vsel %vm2262, %v2246, 0.0
  %v2280 = vsel %vm2262, %v2247, 0.0
  %v2281 = vsel %vm2262, %v2248, 0.0
  %v2282 = vsel %vm2262, %v2249, 0.0
  %v2283 = vsel %vm2262, %v2250, 0.0
  %v2284 = vsel %vm2262, %v2251, 0.0
  %v2285 = vsel %vm2262, %v2252, 0.0
  %v2286 = vsel %vm2262, %v2253, 0.0
  %v2287 = vsel %vm2262, %v2254, 0.0
  %v2288 = vsel %vm2262, %v2255, 0.0
  %v2289 = vsel %vm2262, %v2256, 0.0
  %v2290 = vsel %vm2262, %v2257, 0.0
  %v2291 = vsel %vm2262, %v2258, 0.0
  %v2292 = vsel %vm2262, %v2259, 0.0
  %v2293 = vsel %vm2262, %v2260, 0.0
  %v2294 = vsel %vm2262, %v2261, 0.0
  %2295 = vst [vmem:[%s3] sm:$0xff] %v2263
  %2296 = vst [vmem:[%s3 + $0x8] sm:$0xff] %v2264
  %2297 = vst [vmem:[%s3 + $0x10] sm:$0xff] %v2265
  %2298 = vst [vmem:[%s3 + $0x18] sm:$0xff] %v2266
  %2299 = vst [vmem:[%s3 + $0x20] sm:$0xff] %v2267
  %2300 = vst [vmem:[%s3 + $0x28] sm:$0xff] %v2268
  %2301 = vst [vmem:[%s3 + $0x30] sm:$0xff] %v2269
  %2302 = vst [vmem:[%s3 + $0x38] sm:$0xff] %v2270
  %2303 = vst [vmem:[%s3 + $0x40] sm:$0xff] %v2271
  %2304 = vst [vmem:[%s3 + $0x48] sm:$0xff] %v2272
  %2305 = vst [vmem:[%s3 + $0x50] sm:$0xff] %v2273
  %2306 = vst [vmem:[%s3 + $0x58] sm:$0xff] %v2274
  %2307 = vst [vmem:[%s3 + $0x60] sm:$0xff] %v2275
  %2308 = vst [vmem:[%s3 + $0x68] sm:$0xff] %v2276
  %2309 = vst [vmem:[%s3 + $0x70] sm:$0xff] %v2277
  %2310 = vst [vmem:[%s3 + $0x78] sm:$0xff] %v2278
  %2311 = vst [vmem:[%s3 + $0x80] sm:$0xff] %v2279
  %2312 = vst [vmem:[%s3 + $0x88] sm:$0xff] %v2280
  %2313 = vst [vmem:[%s3 + $0x90] sm:$0xff] %v2281
  %2314 = vst [vmem:[%s3 + $0x98] sm:$0xff] %v2282
  %2315 = vst [vmem:[%s3 + $0xa0] sm:$0xff] %v2283
  %2316 = vst [vmem:[%s3 + $0xa8] sm:$0xff] %v2284
  %2317 = vst [vmem:[%s3 + $0xb0] sm:$0xff] %v2285
  %2318 = vst [vmem:[%s3 + $0xb8] sm:$0xff] %v2286
  %2319 = vst [vmem:[%s3 + $0xc0] sm:$0xff] %v2287
  %2320 = vst [vmem:[%s3 + $0xc8] sm:$0xff] %v2288
  %2321 = vst [vmem:[%s3 + $0xd0] sm:$0xff] %v2289
  %2322 = vst [vmem:[%s3 + $0xd8] sm:$0xff] %v2290
  %2323 = vst [vmem:[%s3 + $0xe0] sm:$0xff] %v2291
  %2324 = vst [vmem:[%s3 + $0xe8] sm:$0xff] %v2292
  %2325 = vst [vmem:[%s3 + $0xf0] sm:$0xff] %v2293
  %2326 = vst [vmem:[%s3 + $0xf8] sm:$0xff] %v2294
  %2327 = vst [vmem:[#allocation2] sm:$0xff] %v2069
  %2328 = vst [vmem:[#allocation2 + $0x8] sm:$0xff] %v2070
  %2329 = vst [vmem:[#allocation2 + $0x10] sm:$0xff] %v2071
  %2330 = vst [vmem:[#allocation2 + $0x18] sm:$0xff] %v2072
  %2331 = vst [vmem:[#allocation2 + $0x20] sm:$0xff] %v2073
  %2332 = vst [vmem:[#allocation2 + $0x28] sm:$0xff] %v2074
  %2333 = vst [vmem:[#allocation2 + $0x30] sm:$0xff] %v2075
  %2334 = vst [vmem:[#allocation2 + $0x38] sm:$0xff] %v2076
  %2335 = vst [vmem:[#allocation2 + $0x40] sm:$0xff] %v2077
  %2336 = vst [vmem:[#allocation2 + $0x48] sm:$0xff] %v2078
  %2337 = vst [vmem:[#allocation2 + $0x50] sm:$0xff] %v2079
  %2338 = vst [vmem:[#allocation2 + $0x58] sm:$0xff] %v2080
  %2339 = vst [vmem:[#allocation2 + $0x60] sm:$0xff] %v2081
  %2340 = vst [vmem:[#allocation2 + $0x68] sm:$0xff] %v2082
  %2341 = vst [vmem:[#allocation2 + $0x70] sm:$0xff] %v2083
  %2342 = vst [vmem:[#allocation2 + $0x78] sm:$0xff] %v2084
  %2343 = vst [vmem:[#allocation2 + $0x80] sm:$0xff] %v2085
  %2344 = vst [vmem:[#allocation2 + $0x88] sm:$0xff] %v2086
  %2345 = vst [vmem:[#allocation2 + $0x90] sm:$0xff] %v2087
  %2346 = vst [vmem:[#allocation2 + $0x98] sm:$0xff] %v2088
  %2347 = vst [vmem:[#allocation2 + $0xa0] sm:$0xff] %v2089
  %2348 = vst [vmem:[#allocation2 + $0xa8] sm:$0xff] %v2090
  %2349 = vst [vmem:[#allocation2 + $0xb0] sm:$0xff] %v2091
  %2350 = vst [vmem:[#allocation2 + $0xb8] sm:$0xff] %v2092
  %2351 = vst [vmem:[#allocation2 + $0xc0] sm:$0xff] %v2093
  %2352 = vst [vmem:[#allocation2 + $0xc8] sm:$0xff] %v2094
  %2353 = vst [vmem:[#allocation2 + $0xd0] sm:$0xff] %v2095
  %2354 = vst [vmem:[#allocation2 + $0xd8] sm:$0xff] %v2096
  %2355 = vst [vmem:[#allocation2 + $0xe0] sm:$0xff] %v2097
  %2356 = vst [vmem:[#allocation2 + $0xe8] sm:$0xff] %v2098
  %2357 = vst [vmem:[#allocation2 + $0xf0] sm:$0xff] %v2099
  %2358 = vst [vmem:[#allocation2 + $0xf8] sm:$0xff] %v2100
  // Predicated region
  $region18: #{_gru_sequence_fwd.1} parent=0 // pred_check
    _
  $region19: #{_gru_sequence_fwd.1} parent=0 // pred_check_branch
    %2360 = sbr.rel (0) target = $region21
  $region20: #{_gru_sequence_fwd.1} parent=0 // pred_region
    _
  $region21: #{_gru_sequence_fwd.1} parent=0 // pred_fallthru
    _
  // Predicated region
  $region22: #{_gru_sequence_fwd.1} parent=0 // pred_check
    _
  $region23: #{_gru_sequence_fwd.1} parent=0 // pred_check_branch
    %2362 = sbr.rel (0) target = $region25
  $region24: #{_gru_sequence_fwd.1} parent=0 // pred_region
    _
  $region25: #{_gru_sequence_fwd.1} parent=0 // pred_fallthru
    _

</llo_original>
